<compile_context>
chip_gen: v6e
topology: v6e:2x2x1
jax: 0.10.0
libtpu: 0.0.40
codegen_flags: <defaults>
</compile_context>

<pallas_src>
import math
import jax
import jax.numpy as jnp
from jax.experimental import pallas as pl
from jax.experimental.pallas import tpu as pltpu

# ---- model hyper-parameters (small, consistent with the module's __init__) ----
NUM_ACTIONS = 64
NUM_STYLES = 4
NUM_UNITS = 32      # LSTM hidden size ("num_units")
NUM_LAYERS = 2      # "num_layers"
STYLE_UNITS = 16    # "style_units"


def make_deepj_kernel(L, B, T, A, S, SU, H):
    """Builds the Pallas kernel for fixed static shapes."""
    f32 = jnp.float32
    bf16 = jnp.bfloat16

    def lstm_cell(gates, c):
        # PyTorch LSTM gate order: i, f, g, o
        i = jax.nn.sigmoid(gates[:, 0 * H:1 * H])
        f = jax.nn.sigmoid(gates[:, 1 * H:2 * H])
        g = jnp.tanh(gates[:, 2 * H:3 * H])
        o = jax.nn.sigmoid(gates[:, 3 * H:4 * H])
        c_new = f * c + i * g
        h_new = o * jnp.tanh(c_new)
        return h_new, c_new

    def kernel(*refs):
        n_in = 4 + 4 + 3 * (L - 1) + 2
        in_refs = refs[:n_in]
        y_ref, hn_ref, cn_ref = refs[n_in:n_in + 3]
        seq_scr, pre_scr = refs[n_in + 3:]

        x_ref, style_ref, ws_ref, bs_ref = in_refs[:4]
        wih0x_ref, wih0s_ref, whh0_ref, b0_ref = in_refs[4:8]
        layer_refs = in_refs[8:8 + 3 * (L - 1)]
        wout_ref, bout_ref = in_refs[8 + 3 * (L - 1):]

        # -------- time-invariant prologue (everything hoisted off the chain) ----
        # style = style_linear(style)                        (B, SU)   [f32]
        sp = jnp.dot(style_ref[...], ws_ref[...],
                     preferred_element_type=f32) + bs_ref[...]
        # style half of the layer-0 input projection + fused (b_ih + b_hh)
        base0 = jnp.dot(sp, wih0s_ref[...],
                        preferred_element_type=f32) + b0_ref[...]      # (B, 4H)
        # x half of the layer-0 input projection for ALL timesteps at once
        pre_scr[...] = jnp.dot(x_ref[...], wih0x_ref[...],
                               preferred_element_type=f32)             # (T*B, 4H)

        # ---------------- layer 0 recurrence (fully unrolled) ----------------
        whh0 = whh0_ref[...]                                           # bf16
        h = jnp.zeros((B, H), f32)
        c = jnp.zeros((B, H), f32)
        for t in range(T):
            gates = (pre_scr[pl.ds(t * B, B), :]
                     + base0
                     + jnp.dot(h.astype(bf16), whh0,
                               preferred_element_type=f32))
            h, c = lstm_cell(gates, c)
            seq_scr[pl.ds(t * B, B), :] = h
        hn_ref[0] = h
        cn_ref[0] = c

        # ---------------- layers 1 .. L-1 ----------------
        for l in range(1, L):
            wih_ref, whh_ref, b_ref = layer_refs[3 * (l - 1):3 * l]
            whh = whh_ref[...]                                         # bf16
            # previous layer's full output sequence is already materialized:
            # hoist its input projection (+ fused bias) into one matmul.
            pre_scr[...] = (jnp.dot(seq_scr[...].astype(bf16), wih_ref[...],
                                    preferred_element_type=f32)
                            + b_ref[...])                              # (T*B, 4H)
            h = jnp.zeros((B, H), f32)
            c = jnp.zeros((B, H), f32)
            for t in range(T):
                gates = (pre_scr[pl.ds(t * B, B), :]
                         + jnp.dot(h.astype(bf16), whh,
                                   preferred_element_type=f32))
                h, c = lstm_cell(gates, c)
                seq_scr[pl.ds(t * B, B), :] = h
            hn_ref[l] = h
            cn_ref[l] = c

        # ---------------- output linear: one matmul, one store ----------------
        y = (jnp.dot(seq_scr[...].astype(bf16), wout_ref[...],
                     preferred_element_type=f32) + bout_ref[...])      # (T*B, A)
        y_ref[...] = y.astype(y_ref.dtype)

    return kernel


def init_params(key):
    """Deterministic synthetic parameters with PyTorch-convention shapes."""
    H, A, S, SU, L = NUM_UNITS, NUM_ACTIONS, NUM_STYLES, STYLE_UNITS, NUM_LAYERS
    params = {}
    n_keys = 2 + 2 + 4 * L
    keys = iter(jax.random.split(key, n_keys))

    def u(k, shape, bound):
        return jax.random.uniform(k, shape, jnp.float32, -bound, bound)

    kb = 1.0 / math.sqrt(S)
    params["w_style"] = u(next(keys), (SU, S), kb)
    params["b_style"] = u(next(keys), (SU,), kb)

    kb = 1.0 / math.sqrt(H)
    for l in range(L):
        in_dim = A + SU if l == 0 else H
        params[f"w_ih_{l}"] = u(next(keys), (4 * H, in_dim), kb)
        params[f"w_hh_{l}"] = u(next(keys), (4 * H, H), kb)
        params[f"b_ih_{l}"] = u(next(keys), (4 * H,), kb)
        params[f"b_hh_{l}"] = u(next(keys), (4 * H,), kb)

    params["w_out"] = u(next(keys), (A, H), kb)
    params["b_out"] = u(next(keys), (A,), kb)
    return params


def deepj_forward_pallas(x, style, params):
    """Equivalent of DeepJ.forward(x, style, states=None)."""
    B, T, A = x.shape
    H, S, SU, L = NUM_UNITS, NUM_STYLES, STYLE_UNITS, NUM_LAYERS
    f32 = jnp.float32
    bf16 = jnp.bfloat16

    # --- glue: time-major flatten (row index = t*B + b) + weight pre-transpose ---
    x_flat = jnp.transpose(x, (1, 0, 2)).reshape(T * B, A).astype(bf16)   # (T*B, A)

    ws = params["w_style"].T.astype(f32)                       # (S, SU)
    bs = params["b_style"][None, :].astype(f32)                # (1, SU)

    w_ih0_t = params["w_ih_0"].T                               # (A+SU, 4H)
    wih0x = w_ih0_t[:A].astype(bf16)                           # (A, 4H)
    wih0s = w_ih0_t[A:].astype(f32)                            # (SU, 4H)
    whh0 = params["w_hh_0"].T.astype(bf16)                     # (H, 4H)
    b0 = (params["b_ih_0"] + params["b_hh_0"])[None, :].astype(f32)   # (1, 4H)

    layer_args = []
    for l in range(1, L):
        layer_args += [
            params[f"w_ih_{l}"].T.astype(bf16),                # (H, 4H)
            params[f"w_hh_{l}"].T.astype(bf16),                # (H, 4H)
            (params[f"b_ih_{l}"] + params[f"b_hh_{l}"])[None, :].astype(f32),
        ]

    wout = params["w_out"].T.astype(bf16)                      # (H, A)
    bout = params["b_out"][None, :].astype(f32)                # (1, A)

    inputs = [x_flat, style.astype(f32), ws, bs,
              wih0x, wih0s, whh0, b0, *layer_args, wout, bout]

    kernel = make_deepj_kernel(L, B, T, A, S, SU, H)

    vmem_spec = pl.BlockSpec(memory_space=pltpu.MemorySpace.VMEM)
    y_flat, h_n, c_n = pl.pallas_call(
        kernel,
        out_shape=(
            jax.ShapeDtypeStruct((T * B, A), f32),
            jax.ShapeDtypeStruct((L, B, H), f32),
            jax.ShapeDtypeStruct((L, B, H), f32),
        ),
        in_specs=[vmem_spec] * len(inputs),
        out_specs=(vmem_spec, vmem_spec, vmem_spec),
        scratch_shapes=[
            pltpu.VMEM((T * B, H), f32),        # current layer's output sequence
            pltpu.VMEM((T * B, 4 * H), f32),    # hoisted per-layer pre-gates
        ],
    )(*inputs)

    y = jnp.transpose(y_flat.reshape(T, B, A), (1, 0, 2))      # back to (B, T, A)
    return y, (h_n, c_n)


def deepj_forward_reference(x, style, params):
    """Pure-JAX reference matching the PyTorch forward semantics (f32)."""
    B, T, A = x.shape
    H, SU, L = NUM_UNITS, STYLE_UNITS, NUM_LAYERS
    sp = style @ params["w_style"].T + params["b_style"]
    layer_in = jnp.concatenate(
        [x, jnp.broadcast_to(sp[:, None, :], (B, T, SU))], axis=2)
    hs, cs = [], []
    for l in range(L):
        w_ih = params[f"w_ih_{l}"]
        w_hh = params[f"w_hh_{l}"]
        b = params[f"b_ih_{l}"] + params[f"b_hh_{l}"]
        h = jnp.zeros((B, H), jnp.float32)
        c = jnp.zeros((B, H), jnp.float32)
        outs = []
        for t in range(T):
            gates = layer_in[:, t, :] @ w_ih.T + h @ w_hh.T + b
            i = jax.nn.sigmoid(gates[:, :H])
            f = jax.nn.sigmoid(gates[:, H:2 * H])
            g = jnp.tanh(gates[:, 2 * H:3 * H])
            o = jax.nn.sigmoid(gates[:, 3 * H:])
            c = f * c + i * g
            h = o * jnp.tanh(c)
            outs.append(h)
        layer_in = jnp.stack(outs, axis=1)
        hs.append(h)
        cs.append(c)
    y = layer_in @ params["w_out"].T + params["b_out"]
    return y, (jnp.stack(hs), jnp.stack(cs))


if __name__ == "__main__":
    B, T = 2, 8
    key = jax.random.PRNGKey(0)
    k_p, k_x, k_s = jax.random.split(key, 3)

    params = init_params(k_p)
    x = jax.random.normal(k_x, (B, T, NUM_ACTIONS), jnp.float32)
    style = jax.random.normal(k_s, (B, NUM_STYLES), jnp.float32)

    y, (h_n, c_n) = deepj_forward_pallas(x, style, params)
    jax.block_until_ready((y, h_n, c_n))

    y_ref, (h_ref, c_ref) = deepj_forward_reference(x, style, params)
    assert y.shape == (B, T, NUM_ACTIONS)
    assert h_n.shape == (NUM_LAYERS, B, NUM_UNITS)
    assert c_n.shape == (NUM_LAYERS, B, NUM_UNITS)
    # bf16 MXU operands with f32 accumulation: well within 1e-2 tolerances.
    assert jnp.allclose(y, y_ref, rtol=1e-2, atol=1e-2)
    assert jnp.allclose(h_n, h_ref, rtol=1e-2, atol=1e-2)
    assert jnp.allclose(c_n, c_ref, rtol=1e-2, atol=1e-2)

    print("KERNEL_OK")
</pallas_src>

<mosaic_0001>
module attributes {stable_mosaic.version = 11 : i64} {
  func.func @kernel(%arg0: memref<16x64xbf16, #tpu.memory_space<vmem>>, %arg1: memref<2x4xf32, #tpu.memory_space<vmem>>, %arg2: memref<4x16xf32, #tpu.memory_space<vmem>>, %arg3: memref<1x16xf32, #tpu.memory_space<vmem>>, %arg4: memref<64x128xbf16, #tpu.memory_space<vmem>>, %arg5: memref<16x128xf32, #tpu.memory_space<vmem>>, %arg6: memref<32x128xbf16, #tpu.memory_space<vmem>>, %arg7: memref<1x128xf32, #tpu.memory_space<vmem>>, %arg8: memref<32x128xbf16, #tpu.memory_space<vmem>>, %arg9: memref<32x128xbf16, #tpu.memory_space<vmem>>, %arg10: memref<1x128xf32, #tpu.memory_space<vmem>>, %arg11: memref<32x64xbf16, #tpu.memory_space<vmem>>, %arg12: memref<1x64xf32, #tpu.memory_space<vmem>>, %arg13: memref<16x64xf32, #tpu.memory_space<vmem>>, %arg14: memref<2x2x32xf32, #tpu.memory_space<vmem>>, %arg15: memref<2x2x32xf32, #tpu.memory_space<vmem>>, %arg16: memref<16x32xf32, #tpu.memory_space<vmem>>, %arg17: memref<16x128xf32, #tpu.memory_space<vmem>>) attributes {dimension_semantics = [], scalar_prefetch = 0 : i64, scratch_operands = 2 : i64, tpu.core_type = #tpu.core_type<tc>} {
    %c0 = arith.constant 0 : index
    %c0_0 = arith.constant 0 : index
    %0 = vector.load %arg1[%c0, %c0_0] : memref<2x4xf32, #tpu.memory_space<vmem>>, vector<2x4xf32>
    %c0_1 = arith.constant 0 : index
    %c0_2 = arith.constant 0 : index
    %1 = vector.load %arg2[%c0_1, %c0_2] : memref<4x16xf32, #tpu.memory_space<vmem>>, vector<4x16xf32>
    %cst = arith.constant dense<0.000000e+00> : vector<2x16xf32>
    %2 = tpu.matmul %0, %1, %cst {dimension_numbers = #tpu.dot_dimension_numbers<[1], [0], [0], [1], [0, 0, 1, 1], [], []>} : vector<2x4xf32>, vector<4x16xf32>, vector<2x16xf32> -> vector<2x16xf32>
    %c0_3 = arith.constant 0 : index
    %c0_4 = arith.constant 0 : index
    %3 = vector.load %arg3[%c0_3, %c0_4] : memref<1x16xf32, #tpu.memory_space<vmem>>, vector<1x16xf32>
    %4 = vector.broadcast %3 : vector<1x16xf32> to vector<2x16xf32>
    %5 = arith.addf %2, %4 : vector<2x16xf32>
    %c0_5 = arith.constant 0 : index
    %c0_6 = arith.constant 0 : index
    %6 = vector.load %arg5[%c0_5, %c0_6] : memref<16x128xf32, #tpu.memory_space<vmem>>, vector<16x128xf32>
    %cst_7 = arith.constant dense<0.000000e+00> : vector<2x128xf32>
    %7 = tpu.matmul %5, %6, %cst_7 {dimension_numbers = #tpu.dot_dimension_numbers<[1], [0], [0], [1], [0, 0, 1, 1], [], []>} : vector<2x16xf32>, vector<16x128xf32>, vector<2x128xf32> -> vector<2x128xf32>
    %c0_8 = arith.constant 0 : index
    %c0_9 = arith.constant 0 : index
    %8 = vector.load %arg7[%c0_8, %c0_9] : memref<1x128xf32, #tpu.memory_space<vmem>>, vector<1x128xf32>
    %9 = vector.broadcast %8 : vector<1x128xf32> to vector<2x128xf32>
    %10 = arith.addf %7, %9 : vector<2x128xf32>
    %c0_10 = arith.constant 0 : index
    %c0_11 = arith.constant 0 : index
    %11 = vector.load %arg0[%c0_10, %c0_11] : memref<16x64xbf16, #tpu.memory_space<vmem>>, vector<16x64xbf16>
    %c0_12 = arith.constant 0 : index
    %c0_13 = arith.constant 0 : index
    %12 = vector.load %arg4[%c0_12, %c0_13] : memref<64x128xbf16, #tpu.memory_space<vmem>>, vector<64x128xbf16>
    %cst_14 = arith.constant dense<0.000000e+00> : vector<16x128xf32>
    %13 = tpu.matmul %11, %12, %cst_14 {dimension_numbers = #tpu.dot_dimension_numbers<[1], [0], [0], [1], [0, 0, 1, 1], [], []>} : vector<16x64xbf16>, vector<64x128xbf16>, vector<16x128xf32> -> vector<16x128xf32>
    %c0_15 = arith.constant 0 : index
    %c0_16 = arith.constant 0 : index
    %14 = vector.load %arg17[%c0_15, %c0_16] : memref<16x128xf32, #tpu.memory_space<vmem>>, vector<16x128xf32>
    tpu.vector_store %arg17[%c0_15, %c0_16], %13 {strides = array<i32>} : memref<16x128xf32, #tpu.memory_space<vmem>>, vector<16x128xf32>,
    %c0_17 = arith.constant 0 : index
    %c0_18 = arith.constant 0 : index
    %15 = vector.load %arg6[%c0_17, %c0_18] : memref<32x128xbf16, #tpu.memory_space<vmem>>, vector<32x128xbf16>
    %cst_19 = arith.constant 0.000000e+00 : f32
    %16 = vector.broadcast %cst_19 : f32 to vector<2x32xf32>
    %cst_20 = arith.constant 0.000000e+00 : f32
    %17 = vector.broadcast %cst_20 : f32 to vector<2x32xf32>
    %c0_21 = arith.constant 0 : index
    %c0_22 = arith.constant 0 : index
    %18 = vector.load %arg17[%c0_21, %c0_22] : memref<16x128xf32, #tpu.memory_space<vmem>>, vector<2x128xf32>
    %19 = arith.addf %18, %10 : vector<2x128xf32>
    %20 = arith.truncf %16 : vector<2x32xf32> to vector<2x32xbf16>
    %cst_23 = arith.constant dense<0.000000e+00> : vector<2x128xf32>
    %21 = tpu.matmul %20, %15, %cst_23 {dimension_numbers = #tpu.dot_dimension_numbers<[1], [0], [0], [1], [0, 0, 1, 1], [], []>} : vector<2x32xbf16>, vector<32x128xbf16>, vector<2x128xf32> -> vector<2x128xf32>
    %22 = arith.addf %19, %21 : vector<2x128xf32>
    %23 = vector.extract_strided_slice %22 {offsets = [0, 0], sizes = [2, 32], strides = [1, 1]} : vector<2x128xf32> to vector<2x32xf32>
    %24 = arith.negf %23 : vector<2x32xf32>
    %25 = math.exp %24 : vector<2x32xf32>
    %cst_24 = arith.constant 1.000000e+00 : f32
    %26 = vector.broadcast %cst_24 : f32 to vector<2x32xf32>
    %27 = arith.addf %26, %25 : vector<2x32xf32>
    %28 = arith.divf %26, %27 : vector<2x32xf32>
    %29 = vector.extract_strided_slice %22 {offsets = [0, 32], sizes = [2, 32], strides = [1, 1]} : vector<2x128xf32> to vector<2x32xf32>
    %30 = arith.negf %29 : vector<2x32xf32>
    %31 = math.exp %30 : vector<2x32xf32>
    %cst_25 = arith.constant 1.000000e+00 : f32
    %32 = vector.broadcast %cst_25 : f32 to vector<2x32xf32>
    %33 = arith.addf %32, %31 : vector<2x32xf32>
    %34 = arith.divf %32, %33 : vector<2x32xf32>
    %35 = vector.extract_strided_slice %22 {offsets = [0, 64], sizes = [2, 32], strides = [1, 1]} : vector<2x128xf32> to vector<2x32xf32>
    %36 = math.tanh %35 : vector<2x32xf32>
    %37 = vector.extract_strided_slice %22 {offsets = [0, 96], sizes = [2, 32], strides = [1, 1]} : vector<2x128xf32> to vector<2x32xf32>
    %38 = arith.negf %37 : vector<2x32xf32>
    %39 = math.exp %38 : vector<2x32xf32>
    %cst_26 = arith.constant 1.000000e+00 : f32
    %40 = vector.broadcast %cst_26 : f32 to vector<2x32xf32>
    %41 = arith.addf %40, %39 : vector<2x32xf32>
    %42 = arith.divf %40, %41 : vector<2x32xf32>
    %43 = arith.mulf %34, %17 : vector<2x32xf32>
    %44 = arith.mulf %28, %36 : vector<2x32xf32>
    %45 = arith.addf %43, %44 : vector<2x32xf32>
    %46 = math.tanh %45 : vector<2x32xf32>
    %47 = arith.mulf %42, %46 : vector<2x32xf32>
    %c0_27 = arith.constant 0 : index
    %c0_28 = arith.constant 0 : index
    %48 = vector.load %arg16[%c0_27, %c0_28] : memref<16x32xf32, #tpu.memory_space<vmem>>, vector<2x32xf32>
    tpu.vector_store %arg16[%c0_27, %c0_28], %47 {strides = array<i32>} : memref<16x32xf32, #tpu.memory_space<vmem>>, vector<2x32xf32>,
    %c2 = arith.constant 2 : index
    %c0_29 = arith.constant 0 : index
    %49 = vector.load %arg17[%c2, %c0_29] : memref<16x128xf32, #tpu.memory_space<vmem>>, vector<2x128xf32>
    %50 = arith.addf %49, %10 : vector<2x128xf32>
    %51 = arith.truncf %47 : vector<2x32xf32> to vector<2x32xbf16>
    %cst_30 = arith.constant dense<0.000000e+00> : vector<2x128xf32>
    %52 = tpu.matmul %51, %15, %cst_30 {dimension_numbers = #tpu.dot_dimension_numbers<[1], [0], [0], [1], [0, 0, 1, 1], [], []>} : vector<2x32xbf16>, vector<32x128xbf16>, vector<2x128xf32> -> vector<2x128xf32>
    %53 = arith.addf %50, %52 : vector<2x128xf32>
    %54 = vector.extract_strided_slice %53 {offsets = [0, 0], sizes = [2, 32], strides = [1, 1]} : vector<2x128xf32> to vector<2x32xf32>
    %55 = arith.negf %54 : vector<2x32xf32>
    %56 = math.exp %55 : vector<2x32xf32>
    %cst_31 = arith.constant 1.000000e+00 : f32
    %57 = vector.broadcast %cst_31 : f32 to vector<2x32xf32>
    %58 = arith.addf %57, %56 : vector<2x32xf32>
    %59 = arith.divf %57, %58 : vector<2x32xf32>
    %60 = vector.extract_strided_slice %53 {offsets = [0, 32], sizes = [2, 32], strides = [1, 1]} : vector<2x128xf32> to vector<2x32xf32>
    %61 = arith.negf %60 : vector<2x32xf32>
    %62 = math.exp %61 : vector<2x32xf32>
    %cst_32 = arith.constant 1.000000e+00 : f32
    %63 = vector.broadcast %cst_32 : f32 to vector<2x32xf32>
    %64 = arith.addf %63, %62 : vector<2x32xf32>
    %65 = arith.divf %63, %64 : vector<2x32xf32>
    %66 = vector.extract_strided_slice %53 {offsets = [0, 64], sizes = [2, 32], strides = [1, 1]} : vector<2x128xf32> to vector<2x32xf32>
    %67 = math.tanh %66 : vector<2x32xf32>
    %68 = vector.extract_strided_slice %53 {offsets = [0, 96], sizes = [2, 32], strides = [1, 1]} : vector<2x128xf32> to vector<2x32xf32>
    %69 = arith.negf %68 : vector<2x32xf32>
    %70 = math.exp %69 : vector<2x32xf32>
    %cst_33 = arith.constant 1.000000e+00 : f32
    %71 = vector.broadcast %cst_33 : f32 to vector<2x32xf32>
    %72 = arith.addf %71, %70 : vector<2x32xf32>
    %73 = arith.divf %71, %72 : vector<2x32xf32>
    %74 = arith.mulf %65, %45 : vector<2x32xf32>
    %75 = arith.mulf %59, %67 : vector<2x32xf32>
    %76 = arith.addf %74, %75 : vector<2x32xf32>
    %77 = math.tanh %76 : vector<2x32xf32>
    %78 = arith.mulf %73, %77 : vector<2x32xf32>
    %c2_34 = arith.constant 2 : index
    %c0_35 = arith.constant 0 : index
    %79 = vector.load %arg16[%c2_34, %c0_35] : memref<16x32xf32, #tpu.memory_space<vmem>>, vector<2x32xf32>
    tpu.vector_store %arg16[%c2_34, %c0_35], %78 {strides = array<i32>} : memref<16x32xf32, #tpu.memory_space<vmem>>, vector<2x32xf32>,
    %c4 = arith.constant 4 : index
    %c0_36 = arith.constant 0 : index
    %80 = vector.load %arg17[%c4, %c0_36] : memref<16x128xf32, #tpu.memory_space<vmem>>, vector<2x128xf32>
    %81 = arith.addf %80, %10 : vector<2x128xf32>
    %82 = arith.truncf %78 : vector<2x32xf32> to vector<2x32xbf16>
    %cst_37 = arith.constant dense<0.000000e+00> : vector<2x128xf32>
    %83 = tpu.matmul %82, %15, %cst_37 {dimension_numbers = #tpu.dot_dimension_numbers<[1], [0], [0], [1], [0, 0, 1, 1], [], []>} : vector<2x32xbf16>, vector<32x128xbf16>, vector<2x128xf32> -> vector<2x128xf32>
    %84 = arith.addf %81, %83 : vector<2x128xf32>
    %85 = vector.extract_strided_slice %84 {offsets = [0, 0], sizes = [2, 32], strides = [1, 1]} : vector<2x128xf32> to vector<2x32xf32>
    %86 = arith.negf %85 : vector<2x32xf32>
    %87 = math.exp %86 : vector<2x32xf32>
    %cst_38 = arith.constant 1.000000e+00 : f32
    %88 = vector.broadcast %cst_38 : f32 to vector<2x32xf32>
    %89 = arith.addf %88, %87 : vector<2x32xf32>
    %90 = arith.divf %88, %89 : vector<2x32xf32>
    %91 = vector.extract_strided_slice %84 {offsets = [0, 32], sizes = [2, 32], strides = [1, 1]} : vector<2x128xf32> to vector<2x32xf32>
    %92 = arith.negf %91 : vector<2x32xf32>
    %93 = math.exp %92 : vector<2x32xf32>
    %cst_39 = arith.constant 1.000000e+00 : f32
    %94 = vector.broadcast %cst_39 : f32 to vector<2x32xf32>
    %95 = arith.addf %94, %93 : vector<2x32xf32>
    %96 = arith.divf %94, %95 : vector<2x32xf32>
    %97 = vector.extract_strided_slice %84 {offsets = [0, 64], sizes = [2, 32], strides = [1, 1]} : vector<2x128xf32> to vector<2x32xf32>
    %98 = math.tanh %97 : vector<2x32xf32>
    %99 = vector.extract_strided_slice %84 {offsets = [0, 96], sizes = [2, 32], strides = [1, 1]} : vector<2x128xf32> to vector<2x32xf32>
    %100 = arith.negf %99 : vector<2x32xf32>
    %101 = math.exp %100 : vector<2x32xf32>
    %cst_40 = arith.constant 1.000000e+00 : f32
    %102 = vector.broadcast %cst_40 : f32 to vector<2x32xf32>
    %103 = arith.addf %102, %101 : vector<2x32xf32>
    %104 = arith.divf %102, %103 : vector<2x32xf32>
    %105 = arith.mulf %96, %76 : vector<2x32xf32>
    %106 = arith.mulf %90, %98 : vector<2x32xf32>
    %107 = arith.addf %105, %106 : vector<2x32xf32>
    %108 = math.tanh %107 : vector<2x32xf32>
    %109 = arith.mulf %104, %108 : vector<2x32xf32>
    %c4_41 = arith.constant 4 : index
    %c0_42 = arith.constant 0 : index
    %110 = vector.load %arg16[%c4_41, %c0_42] : memref<16x32xf32, #tpu.memory_space<vmem>>, vector<2x32xf32>
    tpu.vector_store %arg16[%c4_41, %c0_42], %109 {strides = array<i32>} : memref<16x32xf32, #tpu.memory_space<vmem>>, vector<2x32xf32>,
    %c6 = arith.constant 6 : index
    %c0_43 = arith.constant 0 : index
    %111 = vector.load %arg17[%c6, %c0_43] : memref<16x128xf32, #tpu.memory_space<vmem>>, vector<2x128xf32>
    %112 = arith.addf %111, %10 : vector<2x128xf32>
    %113 = arith.truncf %109 : vector<2x32xf32> to vector<2x32xbf16>
    %cst_44 = arith.constant dense<0.000000e+00> : vector<2x128xf32>
    %114 = tpu.matmul %113, %15, %cst_44 {dimension_numbers = #tpu.dot_dimension_numbers<[1], [0], [0], [1], [0, 0, 1, 1], [], []>} : vector<2x32xbf16>, vector<32x128xbf16>, vector<2x128xf32> -> vector<2x128xf32>
    %115 = arith.addf %112, %114 : vector<2x128xf32>
    %116 = vector.extract_strided_slice %115 {offsets = [0, 0], sizes = [2, 32], strides = [1, 1]} : vector<2x128xf32> to vector<2x32xf32>
    %117 = arith.negf %116 : vector<2x32xf32>
    %118 = math.exp %117 : vector<2x32xf32>
    %cst_45 = arith.constant 1.000000e+00 : f32
    %119 = vector.broadcast %cst_45 : f32 to vector<2x32xf32>
    %120 = arith.addf %119, %118 : vector<2x32xf32>
    %121 = arith.divf %119, %120 : vector<2x32xf32>
    %122 = vector.extract_strided_slice %115 {offsets = [0, 32], sizes = [2, 32], strides = [1, 1]} : vector<2x128xf32> to vector<2x32xf32>
    %123 = arith.negf %122 : vector<2x32xf32>
    %124 = math.exp %123 : vector<2x32xf32>
    %cst_46 = arith.constant 1.000000e+00 : f32
    %125 = vector.broadcast %cst_46 : f32 to vector<2x32xf32>
    %126 = arith.addf %125, %124 : vector<2x32xf32>
    %127 = arith.divf %125, %126 : vector<2x32xf32>
    %128 = vector.extract_strided_slice %115 {offsets = [0, 64], sizes = [2, 32], strides = [1, 1]} : vector<2x128xf32> to vector<2x32xf32>
    %129 = math.tanh %128 : vector<2x32xf32>
    %130 = vector.extract_strided_slice %115 {offsets = [0, 96], sizes = [2, 32], strides = [1, 1]} : vector<2x128xf32> to vector<2x32xf32>
    %131 = arith.negf %130 : vector<2x32xf32>
    %132 = math.exp %131 : vector<2x32xf32>
    %cst_47 = arith.constant 1.000000e+00 : f32
    %133 = vector.broadcast %cst_47 : f32 to vector<2x32xf32>
    %134 = arith.addf %133, %132 : vector<2x32xf32>
    %135 = arith.divf %133, %134 : vector<2x32xf32>
    %136 = arith.mulf %127, %107 : vector<2x32xf32>
    %137 = arith.mulf %121, %129 : vector<2x32xf32>
    %138 = arith.addf %136, %137 : vector<2x32xf32>
    %139 = math.tanh %138 : vector<2x32xf32>
    %140 = arith.mulf %135, %139 : vector<2x32xf32>
    %c6_48 = arith.constant 6 : index
    %c0_49 = arith.constant 0 : index
    %141 = vector.load %arg16[%c6_48, %c0_49] : memref<16x32xf32, #tpu.memory_space<vmem>>, vector<2x32xf32>
    tpu.vector_store %arg16[%c6_48, %c0_49], %140 {strides = array<i32>} : memref<16x32xf32, #tpu.memory_space<vmem>>, vector<2x32xf32>,
    %c8 = arith.constant 8 : index
    %c0_50 = arith.constant 0 : index
    %142 = vector.load %arg17[%c8, %c0_50] : memref<16x128xf32, #tpu.memory_space<vmem>>, vector<2x128xf32>
    %143 = arith.addf %142, %10 : vector<2x128xf32>
    %144 = arith.truncf %140 : vector<2x32xf32> to vector<2x32xbf16>
    %cst_51 = arith.constant dense<0.000000e+00> : vector<2x128xf32>
    %145 = tpu.matmul %144, %15, %cst_51 {dimension_numbers = #tpu.dot_dimension_numbers<[1], [0], [0], [1], [0, 0, 1, 1], [], []>} : vector<2x32xbf16>, vector<32x128xbf16>, vector<2x128xf32> -> vector<2x128xf32>
    %146 = arith.addf %143, %145 : vector<2x128xf32>
    %147 = vector.extract_strided_slice %146 {offsets = [0, 0], sizes = [2, 32], strides = [1, 1]} : vector<2x128xf32> to vector<2x32xf32>
    %148 = arith.negf %147 : vector<2x32xf32>
    %149 = math.exp %148 : vector<2x32xf32>
    %cst_52 = arith.constant 1.000000e+00 : f32
    %150 = vector.broadcast %cst_52 : f32 to vector<2x32xf32>
    %151 = arith.addf %150, %149 : vector<2x32xf32>
    %152 = arith.divf %150, %151 : vector<2x32xf32>
    %153 = vector.extract_strided_slice %146 {offsets = [0, 32], sizes = [2, 32], strides = [1, 1]} : vector<2x128xf32> to vector<2x32xf32>
    %154 = arith.negf %153 : vector<2x32xf32>
    %155 = math.exp %154 : vector<2x32xf32>
    %cst_53 = arith.constant 1.000000e+00 : f32
    %156 = vector.broadcast %cst_53 : f32 to vector<2x32xf32>
    %157 = arith.addf %156, %155 : vector<2x32xf32>
    %158 = arith.divf %156, %157 : vector<2x32xf32>
    %159 = vector.extract_strided_slice %146 {offsets = [0, 64], sizes = [2, 32], strides = [1, 1]} : vector<2x128xf32> to vector<2x32xf32>
    %160 = math.tanh %159 : vector<2x32xf32>
    %161 = vector.extract_strided_slice %146 {offsets = [0, 96], sizes = [2, 32], strides = [1, 1]} : vector<2x128xf32> to vector<2x32xf32>
    %162 = arith.negf %161 : vector<2x32xf32>
    %163 = math.exp %162 : vector<2x32xf32>
    %cst_54 = arith.constant 1.000000e+00 : f32
    %164 = vector.broadcast %cst_54 : f32 to vector<2x32xf32>
    %165 = arith.addf %164, %163 : vector<2x32xf32>
    %166 = arith.divf %164, %165 : vector<2x32xf32>
    %167 = arith.mulf %158, %138 : vector<2x32xf32>
    %168 = arith.mulf %152, %160 : vector<2x32xf32>
    %169 = arith.addf %167, %168 : vector<2x32xf32>
    %170 = math.tanh %169 : vector<2x32xf32>
    %171 = arith.mulf %166, %170 : vector<2x32xf32>
    %c8_55 = arith.constant 8 : index
    %c0_56 = arith.constant 0 : index
    %172 = vector.load %arg16[%c8_55, %c0_56] : memref<16x32xf32, #tpu.memory_space<vmem>>, vector<2x32xf32>
    tpu.vector_store %arg16[%c8_55, %c0_56], %171 {strides = array<i32>} : memref<16x32xf32, #tpu.memory_space<vmem>>, vector<2x32xf32>,
    %c10 = arith.constant 10 : index
    %c0_57 = arith.constant 0 : index
    %173 = vector.load %arg17[%c10, %c0_57] : memref<16x128xf32, #tpu.memory_space<vmem>>, vector<2x128xf32>
    %174 = arith.addf %173, %10 : vector<2x128xf32>
    %175 = arith.truncf %171 : vector<2x32xf32> to vector<2x32xbf16>
    %cst_58 = arith.constant dense<0.000000e+00> : vector<2x128xf32>
    %176 = tpu.matmul %175, %15, %cst_58 {dimension_numbers = #tpu.dot_dimension_numbers<[1], [0], [0], [1], [0, 0, 1, 1], [], []>} : vector<2x32xbf16>, vector<32x128xbf16>, vector<2x128xf32> -> vector<2x128xf32>
    %177 = arith.addf %174, %176 : vector<2x128xf32>
    %178 = vector.extract_strided_slice %177 {offsets = [0, 0], sizes = [2, 32], strides = [1, 1]} : vector<2x128xf32> to vector<2x32xf32>
    %179 = arith.negf %178 : vector<2x32xf32>
    %180 = math.exp %179 : vector<2x32xf32>
    %cst_59 = arith.constant 1.000000e+00 : f32
    %181 = vector.broadcast %cst_59 : f32 to vector<2x32xf32>
    %182 = arith.addf %181, %180 : vector<2x32xf32>
    %183 = arith.divf %181, %182 : vector<2x32xf32>
    %184 = vector.extract_strided_slice %177 {offsets = [0, 32], sizes = [2, 32], strides = [1, 1]} : vector<2x128xf32> to vector<2x32xf32>
    %185 = arith.negf %184 : vector<2x32xf32>
    %186 = math.exp %185 : vector<2x32xf32>
    %cst_60 = arith.constant 1.000000e+00 : f32
    %187 = vector.broadcast %cst_60 : f32 to vector<2x32xf32>
    %188 = arith.addf %187, %186 : vector<2x32xf32>
    %189 = arith.divf %187, %188 : vector<2x32xf32>
    %190 = vector.extract_strided_slice %177 {offsets = [0, 64], sizes = [2, 32], strides = [1, 1]} : vector<2x128xf32> to vector<2x32xf32>
    %191 = math.tanh %190 : vector<2x32xf32>
    %192 = vector.extract_strided_slice %177 {offsets = [0, 96], sizes = [2, 32], strides = [1, 1]} : vector<2x128xf32> to vector<2x32xf32>
    %193 = arith.negf %192 : vector<2x32xf32>
    %194 = math.exp %193 : vector<2x32xf32>
    %cst_61 = arith.constant 1.000000e+00 : f32
    %195 = vector.broadcast %cst_61 : f32 to vector<2x32xf32>
    %196 = arith.addf %195, %194 : vector<2x32xf32>
    %197 = arith.divf %195, %196 : vector<2x32xf32>
    %198 = arith.mulf %189, %169 : vector<2x32xf32>
    %199 = arith.mulf %183, %191 : vector<2x32xf32>
    %200 = arith.addf %198, %199 : vector<2x32xf32>
    %201 = math.tanh %200 : vector<2x32xf32>
    %202 = arith.mulf %197, %201 : vector<2x32xf32>
    %c10_62 = arith.constant 10 : index
    %c0_63 = arith.constant 0 : index
    %203 = vector.load %arg16[%c10_62, %c0_63] : memref<16x32xf32, #tpu.memory_space<vmem>>, vector<2x32xf32>
    tpu.vector_store %arg16[%c10_62, %c0_63], %202 {strides = array<i32>} : memref<16x32xf32, #tpu.memory_space<vmem>>, vector<2x32xf32>,
    %c12 = arith.constant 12 : index
    %c0_64 = arith.constant 0 : index
    %204 = vector.load %arg17[%c12, %c0_64] : memref<16x128xf32, #tpu.memory_space<vmem>>, vector<2x128xf32>
    %205 = arith.addf %204, %10 : vector<2x128xf32>
    %206 = arith.truncf %202 : vector<2x32xf32> to vector<2x32xbf16>
    %cst_65 = arith.constant dense<0.000000e+00> : vector<2x128xf32>
    %207 = tpu.matmul %206, %15, %cst_65 {dimension_numbers = #tpu.dot_dimension_numbers<[1], [0], [0], [1], [0, 0, 1, 1], [], []>} : vector<2x32xbf16>, vector<32x128xbf16>, vector<2x128xf32> -> vector<2x128xf32>
    %208 = arith.addf %205, %207 : vector<2x128xf32>
    %209 = vector.extract_strided_slice %208 {offsets = [0, 0], sizes = [2, 32], strides = [1, 1]} : vector<2x128xf32> to vector<2x32xf32>
    %210 = arith.negf %209 : vector<2x32xf32>
    %211 = math.exp %210 : vector<2x32xf32>
    %cst_66 = arith.constant 1.000000e+00 : f32
    %212 = vector.broadcast %cst_66 : f32 to vector<2x32xf32>
    %213 = arith.addf %212, %211 : vector<2x32xf32>
    %214 = arith.divf %212, %213 : vector<2x32xf32>
    %215 = vector.extract_strided_slice %208 {offsets = [0, 32], sizes = [2, 32], strides = [1, 1]} : vector<2x128xf32> to vector<2x32xf32>
    %216 = arith.negf %215 : vector<2x32xf32>
    %217 = math.exp %216 : vector<2x32xf32>
    %cst_67 = arith.constant 1.000000e+00 : f32
    %218 = vector.broadcast %cst_67 : f32 to vector<2x32xf32>
    %219 = arith.addf %218, %217 : vector<2x32xf32>
    %220 = arith.divf %218, %219 : vector<2x32xf32>
    %221 = vector.extract_strided_slice %208 {offsets = [0, 64], sizes = [2, 32], strides = [1, 1]} : vector<2x128xf32> to vector<2x32xf32>
    %222 = math.tanh %221 : vector<2x32xf32>
    %223 = vector.extract_strided_slice %208 {offsets = [0, 96], sizes = [2, 32], strides = [1, 1]} : vector<2x128xf32> to vector<2x32xf32>
    %224 = arith.negf %223 : vector<2x32xf32>
    %225 = math.exp %224 : vector<2x32xf32>
    %cst_68 = arith.constant 1.000000e+00 : f32
    %226 = vector.broadcast %cst_68 : f32 to vector<2x32xf32>
    %227 = arith.addf %226, %225 : vector<2x32xf32>
    %228 = arith.divf %226, %227 : vector<2x32xf32>
    %229 = arith.mulf %220, %200 : vector<2x32xf32>
    %230 = arith.mulf %214, %222 : vector<2x32xf32>
    %231 = arith.addf %229, %230 : vector<2x32xf32>
    %232 = math.tanh %231 : vector<2x32xf32>
    %233 = arith.mulf %228, %232 : vector<2x32xf32>
    %c12_69 = arith.constant 12 : index
    %c0_70 = arith.constant 0 : index
    %234 = vector.load %arg16[%c12_69, %c0_70] : memref<16x32xf32, #tpu.memory_space<vmem>>, vector<2x32xf32>
    tpu.vector_store %arg16[%c12_69, %c0_70], %233 {strides = array<i32>} : memref<16x32xf32, #tpu.memory_space<vmem>>, vector<2x32xf32>,
    %c14 = arith.constant 14 : index
    %c0_71 = arith.constant 0 : index
    %235 = vector.load %arg17[%c14, %c0_71] : memref<16x128xf32, #tpu.memory_space<vmem>>, vector<2x128xf32>
    %236 = arith.addf %235, %10 : vector<2x128xf32>
    %237 = arith.truncf %233 : vector<2x32xf32> to vector<2x32xbf16>
    %cst_72 = arith.constant dense<0.000000e+00> : vector<2x128xf32>
    %238 = tpu.matmul %237, %15, %cst_72 {dimension_numbers = #tpu.dot_dimension_numbers<[1], [0], [0], [1], [0, 0, 1, 1], [], []>} : vector<2x32xbf16>, vector<32x128xbf16>, vector<2x128xf32> -> vector<2x128xf32>
    %239 = arith.addf %236, %238 : vector<2x128xf32>
    %240 = vector.extract_strided_slice %239 {offsets = [0, 0], sizes = [2, 32], strides = [1, 1]} : vector<2x128xf32> to vector<2x32xf32>
    %241 = arith.negf %240 : vector<2x32xf32>
    %242 = math.exp %241 : vector<2x32xf32>
    %cst_73 = arith.constant 1.000000e+00 : f32
    %243 = vector.broadcast %cst_73 : f32 to vector<2x32xf32>
    %244 = arith.addf %243, %242 : vector<2x32xf32>
    %245 = arith.divf %243, %244 : vector<2x32xf32>
    %246 = vector.extract_strided_slice %239 {offsets = [0, 32], sizes = [2, 32], strides = [1, 1]} : vector<2x128xf32> to vector<2x32xf32>
    %247 = arith.negf %246 : vector<2x32xf32>
    %248 = math.exp %247 : vector<2x32xf32>
    %cst_74 = arith.constant 1.000000e+00 : f32
    %249 = vector.broadcast %cst_74 : f32 to vector<2x32xf32>
    %250 = arith.addf %249, %248 : vector<2x32xf32>
    %251 = arith.divf %249, %250 : vector<2x32xf32>
    %252 = vector.extract_strided_slice %239 {offsets = [0, 64], sizes = [2, 32], strides = [1, 1]} : vector<2x128xf32> to vector<2x32xf32>
    %253 = math.tanh %252 : vector<2x32xf32>
    %254 = vector.extract_strided_slice %239 {offsets = [0, 96], sizes = [2, 32], strides = [1, 1]} : vector<2x128xf32> to vector<2x32xf32>
    %255 = arith.negf %254 : vector<2x32xf32>
    %256 = math.exp %255 : vector<2x32xf32>
    %cst_75 = arith.constant 1.000000e+00 : f32
    %257 = vector.broadcast %cst_75 : f32 to vector<2x32xf32>
    %258 = arith.addf %257, %256 : vector<2x32xf32>
    %259 = arith.divf %257, %258 : vector<2x32xf32>
    %260 = arith.mulf %251, %231 : vector<2x32xf32>
    %261 = arith.mulf %245, %253 : vector<2x32xf32>
    %262 = arith.addf %260, %261 : vector<2x32xf32>
    %263 = math.tanh %262 : vector<2x32xf32>
    %264 = arith.mulf %259, %263 : vector<2x32xf32>
    %c14_76 = arith.constant 14 : index
    %c0_77 = arith.constant 0 : index
    %265 = vector.load %arg16[%c14_76, %c0_77] : memref<16x32xf32, #tpu.memory_space<vmem>>, vector<2x32xf32>
    tpu.vector_store %arg16[%c14_76, %c0_77], %264 {strides = array<i32>} : memref<16x32xf32, #tpu.memory_space<vmem>>, vector<2x32xf32>,
    %c0_78 = arith.constant 0 : index
    %c0_79 = arith.constant 0 : index
    %c0_80 = arith.constant 0 : index
    %266 = vector.load %arg14[%c0_78, %c0_79, %c0_80] : memref<2x2x32xf32, #tpu.memory_space<vmem>>, vector<1x2x32xf32>
    %267 = vector.shape_cast %266 : vector<1x2x32xf32> to vector<2x32xf32>
    %268 = vector.shape_cast %264 : vector<2x32xf32> to vector<1x2x32xf32>
    tpu.vector_store %arg14[%c0_78, %c0_79, %c0_80], %268 {strides = array<i32>} : memref<2x2x32xf32, #tpu.memory_space<vmem>>, vector<1x2x32xf32>,
    %c0_81 = arith.constant 0 : index
    %c0_82 = arith.constant 0 : index
    %c0_83 = arith.constant 0 : index
    %269 = vector.load %arg15[%c0_81, %c0_82, %c0_83] : memref<2x2x32xf32, #tpu.memory_space<vmem>>, vector<1x2x32xf32>
    %270 = vector.shape_cast %269 : vector<1x2x32xf32> to vector<2x32xf32>
    %271 = vector.shape_cast %262 : vector<2x32xf32> to vector<1x2x32xf32>
    tpu.vector_store %arg15[%c0_81, %c0_82, %c0_83], %271 {strides = array<i32>} : memref<2x2x32xf32, #tpu.memory_space<vmem>>, vector<1x2x32xf32>,
    %c0_84 = arith.constant 0 : index
    %c0_85 = arith.constant 0 : index
    %272 = vector.load %arg9[%c0_84, %c0_85] : memref<32x128xbf16, #tpu.memory_space<vmem>>, vector<32x128xbf16>
    %c0_86 = arith.constant 0 : index
    %c0_87 = arith.constant 0 : index
    %273 = vector.load %arg16[%c0_86, %c0_87] : memref<16x32xf32, #tpu.memory_space<vmem>>, vector<16x32xf32>
    %274 = arith.truncf %273 : vector<16x32xf32> to vector<16x32xbf16>
    %c0_88 = arith.constant 0 : index
    %c0_89 = arith.constant 0 : index
    %275 = vector.load %arg8[%c0_88, %c0_89] : memref<32x128xbf16, #tpu.memory_space<vmem>>, vector<32x128xbf16>
    %cst_90 = arith.constant dense<0.000000e+00> : vector<16x128xf32>
    %276 = tpu.matmul %274, %275, %cst_90 {dimension_numbers = #tpu.dot_dimension_numbers<[1], [0], [0], [1], [0, 0, 1, 1], [], []>} : vector<16x32xbf16>, vector<32x128xbf16>, vector<16x128xf32> -> vector<16x128xf32>
    %c0_91 = arith.constant 0 : index
    %c0_92 = arith.constant 0 : index
    %277 = vector.load %arg10[%c0_91, %c0_92] : memref<1x128xf32, #tpu.memory_space<vmem>>, vector<1x128xf32>
    %278 = vector.broadcast %277 : vector<1x128xf32> to vector<16x128xf32>
    %279 = arith.addf %276, %278 : vector<16x128xf32>
    %c0_93 = arith.constant 0 : index
    %c0_94 = arith.constant 0 : index
    %280 = vector.load %arg17[%c0_93, %c0_94] : memref<16x128xf32, #tpu.memory_space<vmem>>, vector<16x128xf32>
    tpu.vector_store %arg17[%c0_93, %c0_94], %279 {strides = array<i32>} : memref<16x128xf32, #tpu.memory_space<vmem>>, vector<16x128xf32>,
    %cst_95 = arith.constant 0.000000e+00 : f32
    %281 = vector.broadcast %cst_95 : f32 to vector<2x32xf32>
    %cst_96 = arith.constant 0.000000e+00 : f32
    %282 = vector.broadcast %cst_96 : f32 to vector<2x32xf32>
    %c0_97 = arith.constant 0 : index
    %c0_98 = arith.constant 0 : index
    %283 = vector.load %arg17[%c0_97, %c0_98] : memref<16x128xf32, #tpu.memory_space<vmem>>, vector<2x128xf32>
    %284 = arith.truncf %281 : vector<2x32xf32> to vector<2x32xbf16>
    %cst_99 = arith.constant dense<0.000000e+00> : vector<2x128xf32>
    %285 = tpu.matmul %284, %272, %cst_99 {dimension_numbers = #tpu.dot_dimension_numbers<[1], [0], [0], [1], [0, 0, 1, 1], [], []>} : vector<2x32xbf16>, vector<32x128xbf16>, vector<2x128xf32> -> vector<2x128xf32>
    %286 = arith.addf %283, %285 : vector<2x128xf32>
    %287 = vector.extract_strided_slice %286 {offsets = [0, 0], sizes = [2, 32], strides = [1, 1]} : vector<2x128xf32> to vector<2x32xf32>
    %288 = arith.negf %287 : vector<2x32xf32>
    %289 = math.exp %288 : vector<2x32xf32>
    %cst_100 = arith.constant 1.000000e+00 : f32
    %290 = vector.broadcast %cst_100 : f32 to vector<2x32xf32>
    %291 = arith.addf %290, %289 : vector<2x32xf32>
    %292 = arith.divf %290, %291 : vector<2x32xf32>
    %293 = vector.extract_strided_slice %286 {offsets = [0, 32], sizes = [2, 32], strides = [1, 1]} : vector<2x128xf32> to vector<2x32xf32>
    %294 = arith.negf %293 : vector<2x32xf32>
    %295 = math.exp %294 : vector<2x32xf32>
    %cst_101 = arith.constant 1.000000e+00 : f32
    %296 = vector.broadcast %cst_101 : f32 to vector<2x32xf32>
    %297 = arith.addf %296, %295 : vector<2x32xf32>
    %298 = arith.divf %296, %297 : vector<2x32xf32>
    %299 = vector.extract_strided_slice %286 {offsets = [0, 64], sizes = [2, 32], strides = [1, 1]} : vector<2x128xf32> to vector<2x32xf32>
    %300 = math.tanh %299 : vector<2x32xf32>
    %301 = vector.extract_strided_slice %286 {offsets = [0, 96], sizes = [2, 32], strides = [1, 1]} : vector<2x128xf32> to vector<2x32xf32>
    %302 = arith.negf %301 : vector<2x32xf32>
    %303 = math.exp %302 : vector<2x32xf32>
    %cst_102 = arith.constant 1.000000e+00 : f32
    %304 = vector.broadcast %cst_102 : f32 to vector<2x32xf32>
    %305 = arith.addf %304, %303 : vector<2x32xf32>
    %306 = arith.divf %304, %305 : vector<2x32xf32>
    %307 = arith.mulf %298, %282 : vector<2x32xf32>
    %308 = arith.mulf %292, %300 : vector<2x32xf32>
    %309 = arith.addf %307, %308 : vector<2x32xf32>
    %310 = math.tanh %309 : vector<2x32xf32>
    %311 = arith.mulf %306, %310 : vector<2x32xf32>
    %c0_103 = arith.constant 0 : index
    %c0_104 = arith.constant 0 : index
    %312 = vector.load %arg16[%c0_103, %c0_104] : memref<16x32xf32, #tpu.memory_space<vmem>>, vector<2x32xf32>
    tpu.vector_store %arg16[%c0_103, %c0_104], %311 {strides = array<i32>} : memref<16x32xf32, #tpu.memory_space<vmem>>, vector<2x32xf32>,
    %c2_105 = arith.constant 2 : index
    %c0_106 = arith.constant 0 : index
    %313 = vector.load %arg17[%c2_105, %c0_106] : memref<16x128xf32, #tpu.memory_space<vmem>>, vector<2x128xf32>
    %314 = arith.truncf %311 : vector<2x32xf32> to vector<2x32xbf16>
    %cst_107 = arith.constant dense<0.000000e+00> : vector<2x128xf32>
    %315 = tpu.matmul %314, %272, %cst_107 {dimension_numbers = #tpu.dot_dimension_numbers<[1], [0], [0], [1], [0, 0, 1, 1], [], []>} : vector<2x32xbf16>, vector<32x128xbf16>, vector<2x128xf32> -> vector<2x128xf32>
    %316 = arith.addf %313, %315 : vector<2x128xf32>
    %317 = vector.extract_strided_slice %316 {offsets = [0, 0], sizes = [2, 32], strides = [1, 1]} : vector<2x128xf32> to vector<2x32xf32>
    %318 = arith.negf %317 : vector<2x32xf32>
    %319 = math.exp %318 : vector<2x32xf32>
    %cst_108 = arith.constant 1.000000e+00 : f32
    %320 = vector.broadcast %cst_108 : f32 to vector<2x32xf32>
    %321 = arith.addf %320, %319 : vector<2x32xf32>
    %322 = arith.divf %320, %321 : vector<2x32xf32>
    %323 = vector.extract_strided_slice %316 {offsets = [0, 32], sizes = [2, 32], strides = [1, 1]} : vector<2x128xf32> to vector<2x32xf32>
    %324 = arith.negf %323 : vector<2x32xf32>
    %325 = math.exp %324 : vector<2x32xf32>
    %cst_109 = arith.constant 1.000000e+00 : f32
    %326 = vector.broadcast %cst_109 : f32 to vector<2x32xf32>
    %327 = arith.addf %326, %325 : vector<2x32xf32>
    %328 = arith.divf %326, %327 : vector<2x32xf32>
    %329 = vector.extract_strided_slice %316 {offsets = [0, 64], sizes = [2, 32], strides = [1, 1]} : vector<2x128xf32> to vector<2x32xf32>
    %330 = math.tanh %329 : vector<2x32xf32>
    %331 = vector.extract_strided_slice %316 {offsets = [0, 96], sizes = [2, 32], strides = [1, 1]} : vector<2x128xf32> to vector<2x32xf32>
    %332 = arith.negf %331 : vector<2x32xf32>
    %333 = math.exp %332 : vector<2x32xf32>
    %cst_110 = arith.constant 1.000000e+00 : f32
    %334 = vector.broadcast %cst_110 : f32 to vector<2x32xf32>
    %335 = arith.addf %334, %333 : vector<2x32xf32>
    %336 = arith.divf %334, %335 : vector<2x32xf32>
    %337 = arith.mulf %328, %309 : vector<2x32xf32>
    %338 = arith.mulf %322, %330 : vector<2x32xf32>
    %339 = arith.addf %337, %338 : vector<2x32xf32>
    %340 = math.tanh %339 : vector<2x32xf32>
    %341 = arith.mulf %336, %340 : vector<2x32xf32>
    %c2_111 = arith.constant 2 : index
    %c0_112 = arith.constant 0 : index
    %342 = vector.load %arg16[%c2_111, %c0_112] : memref<16x32xf32, #tpu.memory_space<vmem>>, vector<2x32xf32>
    tpu.vector_store %arg16[%c2_111, %c0_112], %341 {strides = array<i32>} : memref<16x32xf32, #tpu.memory_space<vmem>>, vector<2x32xf32>,
    %c4_113 = arith.constant 4 : index
    %c0_114 = arith.constant 0 : index
    %343 = vector.load %arg17[%c4_113, %c0_114] : memref<16x128xf32, #tpu.memory_space<vmem>>, vector<2x128xf32>
    %344 = arith.truncf %341 : vector<2x32xf32> to vector<2x32xbf16>
    %cst_115 = arith.constant dense<0.000000e+00> : vector<2x128xf32>
    %345 = tpu.matmul %344, %272, %cst_115 {dimension_numbers = #tpu.dot_dimension_numbers<[1], [0], [0], [1], [0, 0, 1, 1], [], []>} : vector<2x32xbf16>, vector<32x128xbf16>, vector<2x128xf32> -> vector<2x128xf32>
    %346 = arith.addf %343, %345 : vector<2x128xf32>
    %347 = vector.extract_strided_slice %346 {offsets = [0, 0], sizes = [2, 32], strides = [1, 1]} : vector<2x128xf32> to vector<2x32xf32>
    %348 = arith.negf %347 : vector<2x32xf32>
    %349 = math.exp %348 : vector<2x32xf32>
    %cst_116 = arith.constant 1.000000e+00 : f32
    %350 = vector.broadcast %cst_116 : f32 to vector<2x32xf32>
    %351 = arith.addf %350, %349 : vector<2x32xf32>
    %352 = arith.divf %350, %351 : vector<2x32xf32>
    %353 = vector.extract_strided_slice %346 {offsets = [0, 32], sizes = [2, 32], strides = [1, 1]} : vector<2x128xf32> to vector<2x32xf32>
    %354 = arith.negf %353 : vector<2x32xf32>
    %355 = math.exp %354 : vector<2x32xf32>
    %cst_117 = arith.constant 1.000000e+00 : f32
    %356 = vector.broadcast %cst_117 : f32 to vector<2x32xf32>
    %357 = arith.addf %356, %355 : vector<2x32xf32>
    %358 = arith.divf %356, %357 : vector<2x32xf32>
    %359 = vector.extract_strided_slice %346 {offsets = [0, 64], sizes = [2, 32], strides = [1, 1]} : vector<2x128xf32> to vector<2x32xf32>
    %360 = math.tanh %359 : vector<2x32xf32>
    %361 = vector.extract_strided_slice %346 {offsets = [0, 96], sizes = [2, 32], strides = [1, 1]} : vector<2x128xf32> to vector<2x32xf32>
    %362 = arith.negf %361 : vector<2x32xf32>
    %363 = math.exp %362 : vector<2x32xf32>
    %cst_118 = arith.constant 1.000000e+00 : f32
    %364 = vector.broadcast %cst_118 : f32 to vector<2x32xf32>
    %365 = arith.addf %364, %363 : vector<2x32xf32>
    %366 = arith.divf %364, %365 : vector<2x32xf32>
    %367 = arith.mulf %358, %339 : vector<2x32xf32>
    %368 = arith.mulf %352, %360 : vector<2x32xf32>
    %369 = arith.addf %367, %368 : vector<2x32xf32>
    %370 = math.tanh %369 : vector<2x32xf32>
    %371 = arith.mulf %366, %370 : vector<2x32xf32>
    %c4_119 = arith.constant 4 : index
    %c0_120 = arith.constant 0 : index
    %372 = vector.load %arg16[%c4_119, %c0_120] : memref<16x32xf32, #tpu.memory_space<vmem>>, vector<2x32xf32>
    tpu.vector_store %arg16[%c4_119, %c0_120], %371 {strides = array<i32>} : memref<16x32xf32, #tpu.memory_space<vmem>>, vector<2x32xf32>,
    %c6_121 = arith.constant 6 : index
    %c0_122 = arith.constant 0 : index
    %373 = vector.load %arg17[%c6_121, %c0_122] : memref<16x128xf32, #tpu.memory_space<vmem>>, vector<2x128xf32>
    %374 = arith.truncf %371 : vector<2x32xf32> to vector<2x32xbf16>
    %cst_123 = arith.constant dense<0.000000e+00> : vector<2x128xf32>
    %375 = tpu.matmul %374, %272, %cst_123 {dimension_numbers = #tpu.dot_dimension_numbers<[1], [0], [0], [1], [0, 0, 1, 1], [], []>} : vector<2x32xbf16>, vector<32x128xbf16>, vector<2x128xf32> -> vector<2x128xf32>
    %376 = arith.addf %373, %375 : vector<2x128xf32>
    %377 = vector.extract_strided_slice %376 {offsets = [0, 0], sizes = [2, 32], strides = [1, 1]} : vector<2x128xf32> to vector<2x32xf32>
    %378 = arith.negf %377 : vector<2x32xf32>
    %379 = math.exp %378 : vector<2x32xf32>
    %cst_124 = arith.constant 1.000000e+00 : f32
    %380 = vector.broadcast %cst_124 : f32 to vector<2x32xf32>
    %381 = arith.addf %380, %379 : vector<2x32xf32>
    %382 = arith.divf %380, %381 : vector<2x32xf32>
    %383 = vector.extract_strided_slice %376 {offsets = [0, 32], sizes = [2, 32], strides = [1, 1]} : vector<2x128xf32> to vector<2x32xf32>
    %384 = arith.negf %383 : vector<2x32xf32>
    %385 = math.exp %384 : vector<2x32xf32>
    %cst_125 = arith.constant 1.000000e+00 : f32
    %386 = vector.broadcast %cst_125 : f32 to vector<2x32xf32>
    %387 = arith.addf %386, %385 : vector<2x32xf32>
    %388 = arith.divf %386, %387 : vector<2x32xf32>
    %389 = vector.extract_strided_slice %376 {offsets = [0, 64], sizes = [2, 32], strides = [1, 1]} : vector<2x128xf32> to vector<2x32xf32>
    %390 = math.tanh %389 : vector<2x32xf32>
    %391 = vector.extract_strided_slice %376 {offsets = [0, 96], sizes = [2, 32], strides = [1, 1]} : vector<2x128xf32> to vector<2x32xf32>
    %392 = arith.negf %391 : vector<2x32xf32>
    %393 = math.exp %392 : vector<2x32xf32>
    %cst_126 = arith.constant 1.000000e+00 : f32
    %394 = vector.broadcast %cst_126 : f32 to vector<2x32xf32>
    %395 = arith.addf %394, %393 : vector<2x32xf32>
    %396 = arith.divf %394, %395 : vector<2x32xf32>
    %397 = arith.mulf %388, %369 : vector<2x32xf32>
    %398 = arith.mulf %382, %390 : vector<2x32xf32>
    %399 = arith.addf %397, %398 : vector<2x32xf32>
    %400 = math.tanh %399 : vector<2x32xf32>
    %401 = arith.mulf %396, %400 : vector<2x32xf32>
    %c6_127 = arith.constant 6 : index
    %c0_128 = arith.constant 0 : index
    %402 = vector.load %arg16[%c6_127, %c0_128] : memref<16x32xf32, #tpu.memory_space<vmem>>, vector<2x32xf32>
    tpu.vector_store %arg16[%c6_127, %c0_128], %401 {strides = array<i32>} : memref<16x32xf32, #tpu.memory_space<vmem>>, vector<2x32xf32>,
    %c8_129 = arith.constant 8 : index
    %c0_130 = arith.constant 0 : index
    %403 = vector.load %arg17[%c8_129, %c0_130] : memref<16x128xf32, #tpu.memory_space<vmem>>, vector<2x128xf32>
    %404 = arith.truncf %401 : vector<2x32xf32> to vector<2x32xbf16>
    %cst_131 = arith.constant dense<0.000000e+00> : vector<2x128xf32>
    %405 = tpu.matmul %404, %272, %cst_131 {dimension_numbers = #tpu.dot_dimension_numbers<[1], [0], [0], [1], [0, 0, 1, 1], [], []>} : vector<2x32xbf16>, vector<32x128xbf16>, vector<2x128xf32> -> vector<2x128xf32>
    %406 = arith.addf %403, %405 : vector<2x128xf32>
    %407 = vector.extract_strided_slice %406 {offsets = [0, 0], sizes = [2, 32], strides = [1, 1]} : vector<2x128xf32> to vector<2x32xf32>
    %408 = arith.negf %407 : vector<2x32xf32>
    %409 = math.exp %408 : vector<2x32xf32>
    %cst_132 = arith.constant 1.000000e+00 : f32
    %410 = vector.broadcast %cst_132 : f32 to vector<2x32xf32>
    %411 = arith.addf %410, %409 : vector<2x32xf32>
    %412 = arith.divf %410, %411 : vector<2x32xf32>
    %413 = vector.extract_strided_slice %406 {offsets = [0, 32], sizes = [2, 32], strides = [1, 1]} : vector<2x128xf32> to vector<2x32xf32>
    %414 = arith.negf %413 : vector<2x32xf32>
    %415 = math.exp %414 : vector<2x32xf32>
    %cst_133 = arith.constant 1.000000e+00 : f32
    %416 = vector.broadcast %cst_133 : f32 to vector<2x32xf32>
    %417 = arith.addf %416, %415 : vector<2x32xf32>
    %418 = arith.divf %416, %417 : vector<2x32xf32>
    %419 = vector.extract_strided_slice %406 {offsets = [0, 64], sizes = [2, 32], strides = [1, 1]} : vector<2x128xf32> to vector<2x32xf32>
    %420 = math.tanh %419 : vector<2x32xf32>
    %421 = vector.extract_strided_slice %406 {offsets = [0, 96], sizes = [2, 32], strides = [1, 1]} : vector<2x128xf32> to vector<2x32xf32>
    %422 = arith.negf %421 : vector<2x32xf32>
    %423 = math.exp %422 : vector<2x32xf32>
    %cst_134 = arith.constant 1.000000e+00 : f32
    %424 = vector.broadcast %cst_134 : f32 to vector<2x32xf32>
    %425 = arith.addf %424, %423 : vector<2x32xf32>
    %426 = arith.divf %424, %425 : vector<2x32xf32>
    %427 = arith.mulf %418, %399 : vector<2x32xf32>
    %428 = arith.mulf %412, %420 : vector<2x32xf32>
    %429 = arith.addf %427, %428 : vector<2x32xf32>
    %430 = math.tanh %429 : vector<2x32xf32>
    %431 = arith.mulf %426, %430 : vector<2x32xf32>
    %c8_135 = arith.constant 8 : index
    %c0_136 = arith.constant 0 : index
    %432 = vector.load %arg16[%c8_135, %c0_136] : memref<16x32xf32, #tpu.memory_space<vmem>>, vector<2x32xf32>
    tpu.vector_store %arg16[%c8_135, %c0_136], %431 {strides = array<i32>} : memref<16x32xf32, #tpu.memory_space<vmem>>, vector<2x32xf32>,
    %c10_137 = arith.constant 10 : index
    %c0_138 = arith.constant 0 : index
    %433 = vector.load %arg17[%c10_137, %c0_138] : memref<16x128xf32, #tpu.memory_space<vmem>>, vector<2x128xf32>
    %434 = arith.truncf %431 : vector<2x32xf32> to vector<2x32xbf16>
    %cst_139 = arith.constant dense<0.000000e+00> : vector<2x128xf32>
    %435 = tpu.matmul %434, %272, %cst_139 {dimension_numbers = #tpu.dot_dimension_numbers<[1], [0], [0], [1], [0, 0, 1, 1], [], []>} : vector<2x32xbf16>, vector<32x128xbf16>, vector<2x128xf32> -> vector<2x128xf32>
    %436 = arith.addf %433, %435 : vector<2x128xf32>
    %437 = vector.extract_strided_slice %436 {offsets = [0, 0], sizes = [2, 32], strides = [1, 1]} : vector<2x128xf32> to vector<2x32xf32>
    %438 = arith.negf %437 : vector<2x32xf32>
    %439 = math.exp %438 : vector<2x32xf32>
    %cst_140 = arith.constant 1.000000e+00 : f32
    %440 = vector.broadcast %cst_140 : f32 to vector<2x32xf32>
    %441 = arith.addf %440, %439 : vector<2x32xf32>
    %442 = arith.divf %440, %441 : vector<2x32xf32>
    %443 = vector.extract_strided_slice %436 {offsets = [0, 32], sizes = [2, 32], strides = [1, 1]} : vector<2x128xf32> to vector<2x32xf32>
    %444 = arith.negf %443 : vector<2x32xf32>
    %445 = math.exp %444 : vector<2x32xf32>
    %cst_141 = arith.constant 1.000000e+00 : f32
    %446 = vector.broadcast %cst_141 : f32 to vector<2x32xf32>
    %447 = arith.addf %446, %445 : vector<2x32xf32>
    %448 = arith.divf %446, %447 : vector<2x32xf32>
    %449 = vector.extract_strided_slice %436 {offsets = [0, 64], sizes = [2, 32], strides = [1, 1]} : vector<2x128xf32> to vector<2x32xf32>
    %450 = math.tanh %449 : vector<2x32xf32>
    %451 = vector.extract_strided_slice %436 {offsets = [0, 96], sizes = [2, 32], strides = [1, 1]} : vector<2x128xf32> to vector<2x32xf32>
    %452 = arith.negf %451 : vector<2x32xf32>
    %453 = math.exp %452 : vector<2x32xf32>
    %cst_142 = arith.constant 1.000000e+00 : f32
    %454 = vector.broadcast %cst_142 : f32 to vector<2x32xf32>
    %455 = arith.addf %454, %453 : vector<2x32xf32>
    %456 = arith.divf %454, %455 : vector<2x32xf32>
    %457 = arith.mulf %448, %429 : vector<2x32xf32>
    %458 = arith.mulf %442, %450 : vector<2x32xf32>
    %459 = arith.addf %457, %458 : vector<2x32xf32>
    %460 = math.tanh %459 : vector<2x32xf32>
    %461 = arith.mulf %456, %460 : vector<2x32xf32>
    %c10_143 = arith.constant 10 : index
    %c0_144 = arith.constant 0 : index
    %462 = vector.load %arg16[%c10_143, %c0_144] : memref<16x32xf32, #tpu.memory_space<vmem>>, vector<2x32xf32>
    tpu.vector_store %arg16[%c10_143, %c0_144], %461 {strides = array<i32>} : memref<16x32xf32, #tpu.memory_space<vmem>>, vector<2x32xf32>,
    %c12_145 = arith.constant 12 : index
    %c0_146 = arith.constant 0 : index
    %463 = vector.load %arg17[%c12_145, %c0_146] : memref<16x128xf32, #tpu.memory_space<vmem>>, vector<2x128xf32>
    %464 = arith.truncf %461 : vector<2x32xf32> to vector<2x32xbf16>
    %cst_147 = arith.constant dense<0.000000e+00> : vector<2x128xf32>
    %465 = tpu.matmul %464, %272, %cst_147 {dimension_numbers = #tpu.dot_dimension_numbers<[1], [0], [0], [1], [0, 0, 1, 1], [], []>} : vector<2x32xbf16>, vector<32x128xbf16>, vector<2x128xf32> -> vector<2x128xf32>
    %466 = arith.addf %463, %465 : vector<2x128xf32>
    %467 = vector.extract_strided_slice %466 {offsets = [0, 0], sizes = [2, 32], strides = [1, 1]} : vector<2x128xf32> to vector<2x32xf32>
    %468 = arith.negf %467 : vector<2x32xf32>
    %469 = math.exp %468 : vector<2x32xf32>
    %cst_148 = arith.constant 1.000000e+00 : f32
    %470 = vector.broadcast %cst_148 : f32 to vector<2x32xf32>
    %471 = arith.addf %470, %469 : vector<2x32xf32>
    %472 = arith.divf %470, %471 : vector<2x32xf32>
    %473 = vector.extract_strided_slice %466 {offsets = [0, 32], sizes = [2, 32], strides = [1, 1]} : vector<2x128xf32> to vector<2x32xf32>
    %474 = arith.negf %473 : vector<2x32xf32>
    %475 = math.exp %474 : vector<2x32xf32>
    %cst_149 = arith.constant 1.000000e+00 : f32
    %476 = vector.broadcast %cst_149 : f32 to vector<2x32xf32>
    %477 = arith.addf %476, %475 : vector<2x32xf32>
    %478 = arith.divf %476, %477 : vector<2x32xf32>
    %479 = vector.extract_strided_slice %466 {offsets = [0, 64], sizes = [2, 32], strides = [1, 1]} : vector<2x128xf32> to vector<2x32xf32>
    %480 = math.tanh %479 : vector<2x32xf32>
    %481 = vector.extract_strided_slice %466 {offsets = [0, 96], sizes = [2, 32], strides = [1, 1]} : vector<2x128xf32> to vector<2x32xf32>
    %482 = arith.negf %481 : vector<2x32xf32>
    %483 = math.exp %482 : vector<2x32xf32>
    %cst_150 = arith.constant 1.000000e+00 : f32
    %484 = vector.broadcast %cst_150 : f32 to vector<2x32xf32>
    %485 = arith.addf %484, %483 : vector<2x32xf32>
    %486 = arith.divf %484, %485 : vector<2x32xf32>
    %487 = arith.mulf %478, %459 : vector<2x32xf32>
    %488 = arith.mulf %472, %480 : vector<2x32xf32>
    %489 = arith.addf %487, %488 : vector<2x32xf32>
    %490 = math.tanh %489 : vector<2x32xf32>
    %491 = arith.mulf %486, %490 : vector<2x32xf32>
    %c12_151 = arith.constant 12 : index
    %c0_152 = arith.constant 0 : index
    %492 = vector.load %arg16[%c12_151, %c0_152] : memref<16x32xf32, #tpu.memory_space<vmem>>, vector<2x32xf32>
    tpu.vector_store %arg16[%c12_151, %c0_152], %491 {strides = array<i32>} : memref<16x32xf32, #tpu.memory_space<vmem>>, vector<2x32xf32>,
    %c14_153 = arith.constant 14 : index
    %c0_154 = arith.constant 0 : index
    %493 = vector.load %arg17[%c14_153, %c0_154] : memref<16x128xf32, #tpu.memory_space<vmem>>, vector<2x128xf32>
    %494 = arith.truncf %491 : vector<2x32xf32> to vector<2x32xbf16>
    %cst_155 = arith.constant dense<0.000000e+00> : vector<2x128xf32>
    %495 = tpu.matmul %494, %272, %cst_155 {dimension_numbers = #tpu.dot_dimension_numbers<[1], [0], [0], [1], [0, 0, 1, 1], [], []>} : vector<2x32xbf16>, vector<32x128xbf16>, vector<2x128xf32> -> vector<2x128xf32>
    %496 = arith.addf %493, %495 : vector<2x128xf32>
    %497 = vector.extract_strided_slice %496 {offsets = [0, 0], sizes = [2, 32], strides = [1, 1]} : vector<2x128xf32> to vector<2x32xf32>
    %498 = arith.negf %497 : vector<2x32xf32>
    %499 = math.exp %498 : vector<2x32xf32>
    %cst_156 = arith.constant 1.000000e+00 : f32
    %500 = vector.broadcast %cst_156 : f32 to vector<2x32xf32>
    %501 = arith.addf %500, %499 : vector<2x32xf32>
    %502 = arith.divf %500, %501 : vector<2x32xf32>
    %503 = vector.extract_strided_slice %496 {offsets = [0, 32], sizes = [2, 32], strides = [1, 1]} : vector<2x128xf32> to vector<2x32xf32>
    %504 = arith.negf %503 : vector<2x32xf32>
    %505 = math.exp %504 : vector<2x32xf32>
    %cst_157 = arith.constant 1.000000e+00 : f32
    %506 = vector.broadcast %cst_157 : f32 to vector<2x32xf32>
    %507 = arith.addf %506, %505 : vector<2x32xf32>
    %508 = arith.divf %506, %507 : vector<2x32xf32>
    %509 = vector.extract_strided_slice %496 {offsets = [0, 64], sizes = [2, 32], strides = [1, 1]} : vector<2x128xf32> to vector<2x32xf32>
    %510 = math.tanh %509 : vector<2x32xf32>
    %511 = vector.extract_strided_slice %496 {offsets = [0, 96], sizes = [2, 32], strides = [1, 1]} : vector<2x128xf32> to vector<2x32xf32>
    %512 = arith.negf %511 : vector<2x32xf32>
    %513 = math.exp %512 : vector<2x32xf32>
    %cst_158 = arith.constant 1.000000e+00 : f32
    %514 = vector.broadcast %cst_158 : f32 to vector<2x32xf32>
    %515 = arith.addf %514, %513 : vector<2x32xf32>
    %516 = arith.divf %514, %515 : vector<2x32xf32>
    %517 = arith.mulf %508, %489 : vector<2x32xf32>
    %518 = arith.mulf %502, %510 : vector<2x32xf32>
    %519 = arith.addf %517, %518 : vector<2x32xf32>
    %520 = math.tanh %519 : vector<2x32xf32>
    %521 = arith.mulf %516, %520 : vector<2x32xf32>
    %c14_159 = arith.constant 14 : index
    %c0_160 = arith.constant 0 : index
    %522 = vector.load %arg16[%c14_159, %c0_160] : memref<16x32xf32, #tpu.memory_space<vmem>>, vector<2x32xf32>
    tpu.vector_store %arg16[%c14_159, %c0_160], %521 {strides = array<i32>} : memref<16x32xf32, #tpu.memory_space<vmem>>, vector<2x32xf32>,
    %c1 = arith.constant 1 : index
    %c0_161 = arith.constant 0 : index
    %c0_162 = arith.constant 0 : index
    %523 = vector.load %arg14[%c1, %c0_161, %c0_162] : memref<2x2x32xf32, #tpu.memory_space<vmem>>, vector<1x2x32xf32>
    %524 = vector.shape_cast %523 : vector<1x2x32xf32> to vector<2x32xf32>
    %525 = vector.shape_cast %521 : vector<2x32xf32> to vector<1x2x32xf32>
    tpu.vector_store %arg14[%c1, %c0_161, %c0_162], %525 {strides = array<i32>} : memref<2x2x32xf32, #tpu.memory_space<vmem>>, vector<1x2x32xf32>,
    %c1_163 = arith.constant 1 : index
    %c0_164 = arith.constant 0 : index
    %c0_165 = arith.constant 0 : index
    %526 = vector.load %arg15[%c1_163, %c0_164, %c0_165] : memref<2x2x32xf32, #tpu.memory_space<vmem>>, vector<1x2x32xf32>
    %527 = vector.shape_cast %526 : vector<1x2x32xf32> to vector<2x32xf32>
    %528 = vector.shape_cast %519 : vector<2x32xf32> to vector<1x2x32xf32>
    tpu.vector_store %arg15[%c1_163, %c0_164, %c0_165], %528 {strides = array<i32>} : memref<2x2x32xf32, #tpu.memory_space<vmem>>, vector<1x2x32xf32>,
    %c0_166 = arith.constant 0 : index
    %c0_167 = arith.constant 0 : index
    %529 = vector.load %arg16[%c0_166, %c0_167] : memref<16x32xf32, #tpu.memory_space<vmem>>, vector<16x32xf32>
    %530 = arith.truncf %529 : vector<16x32xf32> to vector<16x32xbf16>
    %c0_168 = arith.constant 0 : index
    %c0_169 = arith.constant 0 : index
    %531 = vector.load %arg11[%c0_168, %c0_169] : memref<32x64xbf16, #tpu.memory_space<vmem>>, vector<32x64xbf16>
    %cst_170 = arith.constant dense<0.000000e+00> : vector<16x64xf32>
    %532 = tpu.matmul %530, %531, %cst_170 {dimension_numbers = #tpu.dot_dimension_numbers<[1], [0], [0], [1], [0, 0, 1, 1], [], []>} : vector<16x32xbf16>, vector<32x64xbf16>, vector<16x64xf32> -> vector<16x64xf32>
    %c0_171 = arith.constant 0 : index
    %c0_172 = arith.constant 0 : index
    %533 = vector.load %arg12[%c0_171, %c0_172] : memref<1x64xf32, #tpu.memory_space<vmem>>, vector<1x64xf32>
    %534 = vector.broadcast %533 : vector<1x64xf32> to vector<16x64xf32>
    %535 = arith.addf %532, %534 : vector<16x64xf32>
    %c0_173 = arith.constant 0 : index
    %c0_174 = arith.constant 0 : index
    %536 = vector.load %arg13[%c0_173, %c0_174] : memref<16x64xf32, #tpu.memory_space<vmem>>, vector<16x64xf32>
    tpu.vector_store %arg13[%c0_173, %c0_174], %535 {strides = array<i32>} : memref<16x64xf32, #tpu.memory_space<vmem>>, vector<16x64xf32>,
    return
  }
}

</mosaic_0001>

<llo_original>
// kernel: tpu_custom_call.1
$region0: #{tpu_custom_call.1}
  #allocation0 [shape = 'u32[]', space=smem, size = 0x4, offset = 0x4, fixed_abs, tag = 'smem constant byte address 0x4 - core index']
  #allocation1 [shape = 'u32[144,128]{1,0:T(1,128)}', space=vmem, size = 0x12000, scoped, tag = 'internal scratch']
  #allocation2 [shape = 'f32[16,32]{1,0:T(8,128)}', space=vmem, size = 0x2000, scoped, tag = 'scratch operand']
  #allocation3 [shape = 'f32[16,128]{1,0:T(8,128)}', space=vmem, size = 0x2000, scoped, tag = 'scratch operand']
  %s0 = inlined_call_operand.hbm [shape: bf16[16,64], index: 0, kind: input, shape index: {}]
  %s1 = inlined_call_operand.hbm [shape: f32[2,4], index: 1, kind: input, shape index: {}]
  %s2 = inlined_call_operand.hbm [shape: f32[4,16], index: 2, kind: input, shape index: {}]
  %s3 = inlined_call_operand.hbm [shape: f32[1,16], index: 3, kind: input, shape index: {}]
  %s4 = inlined_call_operand.hbm [shape: bf16[64,128], index: 4, kind: input, shape index: {}]
  %s5 = inlined_call_operand.hbm [shape: f32[16,128], index: 5, kind: input, shape index: {}]
  %s6 = inlined_call_operand.hbm [shape: bf16[32,128], index: 6, kind: input, shape index: {}]
  %s7 = inlined_call_operand.hbm [shape: f32[1,128], index: 7, kind: input, shape index: {}]
  %s8 = inlined_call_operand.hbm [shape: bf16[32,128], index: 8, kind: input, shape index: {}]
  %s9 = inlined_call_operand.vmem [shape: bf16[32,128], index: 9, kind: input, shape index: {}]
  %s10 = inlined_call_operand.vmem [shape: f32[1,128], index: 10, kind: input, shape index: {}]
  %s11 = inlined_call_operand.hbm [shape: bf16[32,64], index: 11, kind: input, shape index: {}]
  %s12 = inlined_call_operand.vmem [shape: f32[1,64], index: 12, kind: input, shape index: {}]
  %s13 = inlined_call_operand.hbm [shape: f32[16,64], index: 13, kind: output, shape index: {0}]
  %s14 = inlined_call_operand.hbm [shape: f32[2,2,32], index: 14, kind: output, shape index: {1}]
  %s15 = inlined_call_operand.hbm [shape: f32[2,2,32], index: 15, kind: output, shape index: {2}]
  %16 = xla_tuple %s13, %s14, %s15
  %s17 = sld [smem:[#allocation0]]
  $region118: #{tpu_custom_call.1} parent=0
    _
  %s19 = ssub.s32 1, %s17
  %s20 = scalar_select 0, %s19, %s17
  $region1: #{tpu_custom_call.1} parent=0
    #allocation4 [shape = 'u8[4096]{0}', space=vmem, size = 0x1000, scoped, tag = 'input window, operand 0, single buffered']
    #allocation5 [shape = 's32[1]{0}', space=sflag, size = 0x4, scoped, tag = 'scoped memory for tpu_custom_call.1']
    #allocation6 [shape = 's32[1]{0}', space=sflag, size = 0x4, scoped, tag = 'scoped memory for tpu_custom_call.1']
    #allocation7 [shape = 'u8[1024]{0}', space=vmem, size = 0x400, scoped, tag = 'input window, operand 1, single buffered']
    #allocation8 [shape = 's32[1]{0}', space=sflag, size = 0x4, scoped, tag = 'scoped memory for tpu_custom_call.1']
    #allocation9 [shape = 'u8[2048]{0}', space=vmem, size = 0x800, scoped, tag = 'input window, operand 2, single buffered']
    #allocation10 [shape = 'u8[512]{0}', space=vmem, size = 0x400, scoped, tag = 'input window, operand 3, single buffered']
    #allocation11 [shape = 's32[1]{0}', space=sflag, size = 0x4, scoped, tag = 'scoped memory for tpu_custom_call.1']
    #allocation12 [shape = 'u8[16384]{0}', space=vmem, size = 0x4000, scoped, tag = 'input window, operand 4, single buffered']
    #allocation13 [shape = 'u8[8192]{0}', space=vmem, size = 0x2000, scoped, tag = 'input window, operand 5, single buffered']
    #allocation14 [shape = 's32[1]{0}', space=sflag, size = 0x4, scoped, tag = 'scoped memory for tpu_custom_call.1']
    #allocation15 [shape = 'u8[8192]{0}', space=vmem, size = 0x2000, scoped, tag = 'input window, operand 6, single buffered']
    #allocation16 [shape = 'u8[512]{0}', space=vmem, size = 0x400, scoped, tag = 'input window, operand 7, single buffered']
    #allocation17 [shape = 's32[1]{0}', space=sflag, size = 0x4, scoped, tag = 'scoped memory for tpu_custom_call.1']
    #allocation18 [shape = 'u8[8192]{0}', space=vmem, size = 0x2000, scoped, tag = 'input window, operand 8, single buffered']
    #allocation19 [shape = 'u8[8192]{0}', space=vmem, size = 0x2000, scoped, tag = 'input window, operand 11, single buffered']
    #allocation20 [shape = 's32[1]{0}', space=sflag, size = 0x4, scoped, tag = 'scoped memory for tpu_custom_call.1']
    #allocation21 [shape = 'u8[8192]{0}', space=vmem, size = 0x2000, scoped, tag = 'output window, operand 0, single buffered']
    #allocation22 [shape = 'u8[2048]{0}', space=vmem, size = 0x800, scoped, tag = 'output window, operand 1, single buffered']
    #allocation23 [shape = 's32[1]{0}', space=sflag, size = 0x4, scoped, tag = 'scoped memory for tpu_custom_call.1']
    #allocation24 [shape = 'u8[2048]{0}', space=vmem, size = 0x800, scoped, tag = 'output window, operand 2, single buffered']
    %21 = vsyncpa [#allocation5], 0
    %22 = vsyncpa [#allocation8], 0
    %23 = vsyncpa [#allocation11], 0
    %24 = vsyncpa [#allocation14], 0
    %25 = vsyncpa [#allocation17], 0
    %26 = vsyncpa [#allocation20], 0
    %27 = vsyncpa [#allocation6], 0
    %28 = vsyncpa [#allocation23], 0
    // Predicated region
    $region2: #{tpu_custom_call.1} parent=1 // pred_check
      _
    $region3: #{tpu_custom_call.1} parent=1 // pred_check_branch
      %30 = sbr.rel (0) target = $region5
    $region4: #{tpu_custom_call.1} parent=1 // pred_region
      %s32 = ssub.s32 128, 128
      %33 = vsyncadd [#allocation5], %s32
      %s34 = sshll.u32 [#allocation4], 4
      %s35 = int_to_ptr.vmem [resolvable:$true] %s34
      %40 = dma.hbm_to_vmem [thread:$0]  %s0, 128, %s35, [#allocation5], 64, 64, 4
    $region5: #{tpu_custom_call.1} parent=1 // pred_fallthru
      _
    // Predicated region
    $region6: #{tpu_custom_call.1} parent=1 // pred_check
      _
    $region7: #{tpu_custom_call.1} parent=1 // pred_check_branch
      %42 = sbr.rel (0) target = $region9
    $region8: #{tpu_custom_call.1} parent=1 // pred_region
      %s44 = ssub.s32 32, 32
      %45 = vsyncadd [#allocation8], %s44
      %s47 = sshll.u32 [#allocation7], 4
      %s48 = int_to_ptr.vmem [resolvable:$true] %s47
      %50 = dma.hbm_to_vmem [thread:$0]  %s1, 32, %s48, [#allocation8]
    $region9: #{tpu_custom_call.1} parent=1 // pred_fallthru
      _
    // Predicated region
    $region10: #{tpu_custom_call.1} parent=1 // pred_check
      _
    $region11: #{tpu_custom_call.1} parent=1 // pred_check_branch
      %52 = sbr.rel (0) target = $region13
    $region12: #{tpu_custom_call.1} parent=1 // pred_region
      %s54 = ssub.s32 64, 64
      %55 = vsyncadd [#allocation8], %s54
      %s57 = sshll.u32 [#allocation9], 4
      %s58 = int_to_ptr.vmem [resolvable:$true] %s57
      %60 = dma.hbm_to_vmem [thread:$0]  %s2, 64, %s58, [#allocation8]
    $region13: #{tpu_custom_call.1} parent=1 // pred_fallthru
      _
    // Predicated region
    $region14: #{tpu_custom_call.1} parent=1 // pred_check
      _
    $region15: #{tpu_custom_call.1} parent=1 // pred_check_branch
      %62 = sbr.rel (0) target = $region17
    $region16: #{tpu_custom_call.1} parent=1 // pred_region
      %s64 = ssub.s32 16, 16
      %65 = vsyncadd [#allocation11], %s64
      %s67 = sshll.u32 [#allocation10], 4
      %s68 = int_to_ptr.vmem [resolvable:$true] %s67
      %70 = dma.hbm_to_vmem [thread:$0]  %s3, 16, %s68, [#allocation11]
    $region17: #{tpu_custom_call.1} parent=1 // pred_fallthru
      _
    // Predicated region
    $region18: #{tpu_custom_call.1} parent=1 // pred_check
      _
    $region19: #{tpu_custom_call.1} parent=1 // pred_check_branch
      %72 = sbr.rel (0) target = $region21
    $region20: #{tpu_custom_call.1} parent=1 // pred_region
      %s74 = ssub.s32 512, 512
      %75 = vsyncadd [#allocation11], %s74
      %s76 = sshll.u32 [#allocation12], 4
      %s77 = int_to_ptr.vmem [resolvable:$true] %s76
      %82 = dma.hbm_to_vmem [thread:$0]  %s4, 512, %s77, [#allocation11], 64, 64, 4
    $region21: #{tpu_custom_call.1} parent=1 // pred_fallthru
      _
    // Predicated region
    $region22: #{tpu_custom_call.1} parent=1 // pred_check
      _
    $region23: #{tpu_custom_call.1} parent=1 // pred_check_branch
      %84 = sbr.rel (0) target = $region25
    $region24: #{tpu_custom_call.1} parent=1 // pred_region
      %s86 = ssub.s32 256, 256
      %87 = vsyncadd [#allocation14], %s86
      %s88 = sshll.u32 [#allocation13], 4
      %s89 = int_to_ptr.vmem [resolvable:$true] %s88
      %94 = dma.hbm_to_vmem [thread:$0]  %s5, 256, %s89, [#allocation14], 128, 128, 8
    $region25: #{tpu_custom_call.1} parent=1 // pred_fallthru
      _
    // Predicated region
    $region26: #{tpu_custom_call.1} parent=1 // pred_check
      _
    $region27: #{tpu_custom_call.1} parent=1 // pred_check_branch
      %96 = sbr.rel (0) target = $region29
    $region28: #{tpu_custom_call.1} parent=1 // pred_region
      %s98 = ssub.s32 256, 256
      %99 = vsyncadd [#allocation14], %s98
      %s100 = sshll.u32 [#allocation15], 4
      %s101 = int_to_ptr.vmem [resolvable:$true] %s100
      %106 = dma.hbm_to_vmem [thread:$0]  %s6, 256, %s101, [#allocation14], 64, 64, 4
    $region29: #{tpu_custom_call.1} parent=1 // pred_fallthru
      _
    // Predicated region
    $region30: #{tpu_custom_call.1} parent=1 // pred_check
      _
    $region31: #{tpu_custom_call.1} parent=1 // pred_check_branch
      %108 = sbr.rel (0) target = $region33
    $region32: #{tpu_custom_call.1} parent=1 // pred_region
      %s110 = ssub.s32 16, 16
      %111 = vsyncadd [#allocation17], %s110
      %s113 = sshll.u32 [#allocation16], 4
      %s114 = int_to_ptr.vmem [resolvable:$true] %s113
      %116 = dma.hbm_to_vmem [thread:$0]  %s7, 16, %s114, [#allocation17]
    $region33: #{tpu_custom_call.1} parent=1 // pred_fallthru
      _
    // Predicated region
    $region34: #{tpu_custom_call.1} parent=1 // pred_check
      _
    $region35: #{tpu_custom_call.1} parent=1 // pred_check_branch
      %118 = sbr.rel (0) target = $region37
    $region36: #{tpu_custom_call.1} parent=1 // pred_region
      %s120 = ssub.s32 256, 256
      %121 = vsyncadd [#allocation17], %s120
      %s122 = sshll.u32 [#allocation18], 4
      %s123 = int_to_ptr.vmem [resolvable:$true] %s122
      %128 = dma.hbm_to_vmem [thread:$0]  %s8, 256, %s123, [#allocation17], 64, 64, 4
    $region37: #{tpu_custom_call.1} parent=1 // pred_fallthru
      _
    // Predicated region
    $region38: #{tpu_custom_call.1} parent=1 // pred_check
      _
    $region39: #{tpu_custom_call.1} parent=1 // pred_check_branch
      %130 = sbr.rel (0) target = $region41
    $region40: #{tpu_custom_call.1} parent=1 // pred_region
      _
    $region41: #{tpu_custom_call.1} parent=1 // pred_fallthru
      _
    // Predicated region
    $region42: #{tpu_custom_call.1} parent=1 // pred_check
      _
    $region43: #{tpu_custom_call.1} parent=1 // pred_check_branch
      %132 = sbr.rel (0) target = $region45
    $region44: #{tpu_custom_call.1} parent=1 // pred_region
      _
    $region45: #{tpu_custom_call.1} parent=1 // pred_fallthru
      _
    // Predicated region
    $region46: #{tpu_custom_call.1} parent=1 // pred_check
      _
    $region47: #{tpu_custom_call.1} parent=1 // pred_check_branch
      %134 = sbr.rel (0) target = $region49
    $region48: #{tpu_custom_call.1} parent=1 // pred_region
      %s136 = ssub.s32 256, 256
      %137 = vsyncadd [#allocation20], %s136
      %s138 = sshll.u32 [#allocation19], 4
      %s139 = int_to_ptr.vmem [resolvable:$true] %s138
      %144 = dma.hbm_to_vmem [thread:$0]  %s11, 256, %s139, [#allocation20], 64, 64, 4
    $region49: #{tpu_custom_call.1} parent=1 // pred_fallthru
      _
    // Predicated region
    $region50: #{tpu_custom_call.1} parent=1 // pred_check
      _
    $region51: #{tpu_custom_call.1} parent=1 // pred_check_branch
      %146 = sbr.rel (0) target = $region53
    $region52: #{tpu_custom_call.1} parent=1 // pred_region
      _
    $region53: #{tpu_custom_call.1} parent=1 // pred_fallthru
      _
    // Predicated region
    $region54: #{tpu_custom_call.1} parent=1 // pred_check
      _
    $region55: #{tpu_custom_call.1} parent=1 // pred_check_branch
      %148 = sbr.rel (0) target = $region57
    $region56: #{tpu_custom_call.1} parent=1 // pred_region
      %149 = dma.done [#allocation5], 128
    $region57: #{tpu_custom_call.1} parent=1 // pred_fallthru
      _
    // Predicated region
    $region58: #{tpu_custom_call.1} parent=1 // pred_check
      _
    $region59: #{tpu_custom_call.1} parent=1 // pred_check_branch
      %151 = sbr.rel (0) target = $region61
    $region60: #{tpu_custom_call.1} parent=1 // pred_region
      %152 = dma.done [#allocation8], 32
    $region61: #{tpu_custom_call.1} parent=1 // pred_fallthru
      _
    // Predicated region
    $region62: #{tpu_custom_call.1} parent=1 // pred_check
      _
    $region63: #{tpu_custom_call.1} parent=1 // pred_check_branch
      %154 = sbr.rel (0) target = $region65
    $region64: #{tpu_custom_call.1} parent=1 // pred_region
      %155 = dma.done [#allocation8], 64
    $region65: #{tpu_custom_call.1} parent=1 // pred_fallthru
      _
    // Predicated region
    $region66: #{tpu_custom_call.1} parent=1 // pred_check
      _
    $region67: #{tpu_custom_call.1} parent=1 // pred_check_branch
      %157 = sbr.rel (0) target = $region69
    $region68: #{tpu_custom_call.1} parent=1 // pred_region
      %158 = dma.done [#allocation11], 16
    $region69: #{tpu_custom_call.1} parent=1 // pred_fallthru
      _
    // Predicated region
    $region70: #{tpu_custom_call.1} parent=1 // pred_check
      _
    $region71: #{tpu_custom_call.1} parent=1 // pred_check_branch
      %160 = sbr.rel (0) target = $region73
    $region72: #{tpu_custom_call.1} parent=1 // pred_region
      %161 = dma.done [#allocation11], 512
    $region73: #{tpu_custom_call.1} parent=1 // pred_fallthru
      _
    // Predicated region
    $region74: #{tpu_custom_call.1} parent=1 // pred_check
      _
    $region75: #{tpu_custom_call.1} parent=1 // pred_check_branch
      %163 = sbr.rel (0) target = $region77
    $region76: #{tpu_custom_call.1} parent=1 // pred_region
      %164 = dma.done [#allocation14], 256
    $region77: #{tpu_custom_call.1} parent=1 // pred_fallthru
      _
    // Predicated region
    $region78: #{tpu_custom_call.1} parent=1 // pred_check
      _
    $region79: #{tpu_custom_call.1} parent=1 // pred_check_branch
      %166 = sbr.rel (0) target = $region81
    $region80: #{tpu_custom_call.1} parent=1 // pred_region
      %167 = dma.done [#allocation14], 256
    $region81: #{tpu_custom_call.1} parent=1 // pred_fallthru
      _
    // Predicated region
    $region82: #{tpu_custom_call.1} parent=1 // pred_check
      _
    $region83: #{tpu_custom_call.1} parent=1 // pred_check_branch
      %169 = sbr.rel (0) target = $region85
    $region84: #{tpu_custom_call.1} parent=1 // pred_region
      %170 = dma.done [#allocation17], 16
    $region85: #{tpu_custom_call.1} parent=1 // pred_fallthru
      _
    // Predicated region
    $region86: #{tpu_custom_call.1} parent=1 // pred_check
      _
    $region87: #{tpu_custom_call.1} parent=1 // pred_check_branch
      %172 = sbr.rel (0) target = $region89
    $region88: #{tpu_custom_call.1} parent=1 // pred_region
      %173 = dma.done [#allocation17], 256
    $region89: #{tpu_custom_call.1} parent=1 // pred_fallthru
      _
    // Predicated region
    $region90: #{tpu_custom_call.1} parent=1 // pred_check
      _
    $region91: #{tpu_custom_call.1} parent=1 // pred_check_branch
      %175 = sbr.rel (0) target = $region93
    $region92: #{tpu_custom_call.1} parent=1 // pred_region
      %176 = dma.done [#allocation20], 256
    $region93: #{tpu_custom_call.1} parent=1 // pred_fallthru
      _
    %v178 = vld [vmem:[#allocation7] sm:$0x3]
    %v179 = vld [vmem:[#allocation9] sm:$0xf]
    %v180 = vld [vmem:[#allocation10] sm:$0x1]
    %v182 = vlaneseq
    %v183 = vshrl.u32 %v182, 7
    %v184 = vsub.s32 0, %v183
    %v185 = vrot.slane %v180, %v184
    %vm187 = vcmask 31744
    %v189 = vsel %vm187, %v178, 0
    %vm191 = vcmask 1043456
    %v193 = vsel %vm191, %v179, 0
    %195 = vmatprep.subr.mxu0 0.0
    %196 = vmatpush1.msra.mxu0 0.0
    %197 = vmatprep.subr.mxu0 0.0
    %198 = vmatpush1.msra.mxu0 0.0
    %199 = vmatprep.subr.mxu0 0.0
    %200 = vmatpush1.msra.mxu0 0.0
    %201 = vmatprep.subr.mxu0 0.0
    %202 = vmatpush1.msra.mxu0 0.0
    %203 = vmatprep.subr.mxu0 0.0
    %204 = vmatpush1.msra.mxu0 0.0
    %205 = vmatprep.subr.mxu0 0.0
    %206 = vmatpush1.msra.mxu0 0.0
    %207 = vmatprep.subr.mxu0 0.0
    %208 = vmatpush1.msra.mxu0 0.0
    %209 = vmatprep.subr.mxu0 0.0
    %210 = vmatpush1.msra.mxu0 0.0
    %211 = vmatprep.subr.mxu0 0.0
    %212 = vmatpush1.msra.mxu0 0.0
    %213 = vmatprep.subr.mxu0 0.0
    %214 = vmatpush1.msra.mxu0 0.0
    %215 = vmatprep.subr.mxu0 0.0
    %216 = vmatpush1.msra.mxu0 0.0
    %217 = vmatprep.subr.mxu0 0.0
    %218 = vmatpush1.msra.mxu0 0.0
    %219 = vmatprep.subr.mxu0 0.0
    %220 = vmatpush1.msra.mxu0 0.0
    %221 = vmatprep.subr.mxu0 0.0
    %222 = vmatpush1.msra.mxu0 0.0
    %223 = vmatprep.subr.mxu0 0.0
    %224 = vmatpush1.msra.mxu0 0.0
    %225 = vmatprep.subr.mxu0 0.0
    %226 = vmatpush1.msra.mxu0 %v193
    %227 = vmatprep.subr.mxu0 0.0
    %228 = vmatpush2.msra.mxu0 0.0
    %229 = vmatprep.subr.mxu0 0.0
    %230 = vmatpush2.msra.mxu0 0.0
    %231 = vmatprep.subr.mxu0 0.0
    %232 = vmatpush2.msra.mxu0 0.0
    %233 = vmatprep.subr.mxu0 0.0
    %234 = vmatpush2.msra.mxu0 0.0
    %235 = vmatprep.subr.mxu0 0.0
    %236 = vmatpush2.msra.mxu0 0.0
    %237 = vmatprep.subr.mxu0 0.0
    %238 = vmatpush2.msra.mxu0 0.0
    %239 = vmatprep.subr.mxu0 0.0
    %240 = vmatpush2.msra.mxu0 0.0
    %241 = vmatprep.subr.mxu0 0.0
    %242 = vmatpush2.msra.mxu0 0.0
    %243 = vmatprep.subr.mxu0 0.0
    %244 = vmatpush2.msra.mxu0 0.0
    %245 = vmatprep.subr.mxu0 0.0
    %246 = vmatpush2.msra.mxu0 0.0
    %247 = vmatprep.subr.mxu0 0.0
    %248 = vmatpush2.msra.mxu0 0.0
    %249 = vmatprep.subr.mxu0 0.0
    %250 = vmatpush2.msra.mxu0 0.0
    %251 = vmatprep.subr.mxu0 0.0
    %252 = vmatpush2.msra.mxu0 0.0
    %253 = vmatprep.subr.mxu0 0.0
    %254 = vmatpush2.msra.mxu0 0.0
    %255 = vmatprep.subr.mxu0 0.0
    %256 = vmatpush2.msra.mxu0 0.0
    %257 = vmatprep.subr.mxu0 0.0
    %258 = vmatpush2.msra.mxu0 0.0
    %259 = vmatprep.mubr.f32.mxu0 0.0
    %260 = vmatmul.mubr.f32.gmra.mxu0 %v189
    %v261 = vpop.f32.mrf.mxu0
    %v262 = vadd.f32 %v185, %v261
    %v263 = vpop.f32.mrf.mxu0
    %264 = vdwg.mxu0
    %v265 = vld [vmem:[#allocation13] sm:$0xff]
    %v266 = vld [vmem:[#allocation13 + $0x8] sm:$0xff]
    %v267 = vld [vmem:[#allocation16] sm:$0x1]
    %v269 = vlaneseq
    %v270 = vshrl.u32 %v269, 7
    %v271 = vsub.s32 0, %v270
    %v272 = vrot.slane %v267, %v271
    %vm274 = vcmask 130048
    %v276 = vsel %vm274, %v262, 0
    %278 = vmatprep.subr.mxu0 0.0
    %279 = vmatpush1.msra.mxu0 0.0
    %280 = vmatprep.subr.mxu0 0.0
    %281 = vmatpush1.msra.mxu0 0.0
    %282 = vmatprep.subr.mxu0 0.0
    %283 = vmatpush1.msra.mxu0 0.0
    %284 = vmatprep.subr.mxu0 0.0
    %285 = vmatpush1.msra.mxu0 0.0
    %286 = vmatprep.subr.mxu0 0.0
    %287 = vmatpush1.msra.mxu0 0.0
    %288 = vmatprep.subr.mxu0 0.0
    %289 = vmatpush1.msra.mxu0 0.0
    %290 = vmatprep.subr.mxu0 0.0
    %291 = vmatpush1.msra.mxu0 0.0
    %292 = vmatprep.subr.mxu0 0.0
    %293 = vmatpush1.msra.mxu0 0.0
    %294 = vmatprep.subr.mxu0 0.0
    %295 = vmatpush1.msra.mxu0 0.0
    %296 = vmatprep.subr.mxu0 0.0
    %297 = vmatpush1.msra.mxu0 0.0
    %298 = vmatprep.subr.mxu0 0.0
    %299 = vmatpush1.msra.mxu0 0.0
    %300 = vmatprep.subr.mxu0 0.0
    %301 = vmatpush1.msra.mxu0 0.0
    %302 = vmatprep.subr.mxu0 0.0
    %303 = vmatpush1.msra.mxu0 0.0
    %304 = vmatprep.subr.mxu0 0.0
    %305 = vmatpush1.msra.mxu0 0.0
    %306 = vmatprep.subr.mxu0 0.0
    %307 = vmatpush1.msra.mxu0 %v266
    %308 = vmatprep.subr.mxu0 0.0
    %309 = vmatpush1.msra.mxu0 %v265
    %310 = vmatprep.subr.mxu0 0.0
    %311 = vmatpush2.msra.mxu0 0.0
    %312 = vmatprep.subr.mxu0 0.0
    %313 = vmatpush2.msra.mxu0 0.0
    %314 = vmatprep.subr.mxu0 0.0
    %315 = vmatpush2.msra.mxu0 0.0
    %316 = vmatprep.subr.mxu0 0.0
    %317 = vmatpush2.msra.mxu0 0.0
    %318 = vmatprep.subr.mxu0 0.0
    %319 = vmatpush2.msra.mxu0 0.0
    %320 = vmatprep.subr.mxu0 0.0
    %321 = vmatpush2.msra.mxu0 0.0
    %322 = vmatprep.subr.mxu0 0.0
    %323 = vmatpush2.msra.mxu0 0.0
    %324 = vmatprep.subr.mxu0 0.0
    %325 = vmatpush2.msra.mxu0 0.0
    %326 = vmatprep.subr.mxu0 0.0
    %327 = vmatpush2.msra.mxu0 0.0
    %328 = vmatprep.subr.mxu0 0.0
    %329 = vmatpush2.msra.mxu0 0.0
    %330 = vmatprep.subr.mxu0 0.0
    %331 = vmatpush2.msra.mxu0 0.0
    %332 = vmatprep.subr.mxu0 0.0
    %333 = vmatpush2.msra.mxu0 0.0
    %334 = vmatprep.subr.mxu0 0.0
    %335 = vmatpush2.msra.mxu0 0.0
    %336 = vmatprep.subr.mxu0 0.0
    %337 = vmatpush2.msra.mxu0 0.0
    %338 = vmatprep.subr.mxu0 0.0
    %339 = vmatpush2.msra.mxu0 0.0
    %340 = vmatprep.subr.mxu0 0.0
    %341 = vmatpush2.msra.mxu0 0.0
    %342 = vmatprep.mubr.f32.mxu0 0.0
    %343 = vmatmul.mubr.f32.gmra.mxu0 %v276
    %v344 = vpop.f32.mrf.mxu0
    %v345 = vadd.f32 %v272, %v344
    %v346 = vpop.f32.mrf.mxu0
    %347 = vdwg.mxu0
    %v348 = vld [vmem:[#allocation4] sm:$0xf]
    %v349 = vld [vmem:[#allocation4 + $0x4] sm:$0xf]
    %v350 = vld [vmem:[#allocation12] sm:$0xf]
    %v351 = vld [vmem:[#allocation12 + $0x4] sm:$0xf]
    %v352 = vld [vmem:[#allocation12 + $0x8] sm:$0xf]
    %v353 = vld [vmem:[#allocation12 + $0xc] sm:$0xf]
    %v354 = vld [vmem:[#allocation12 + $0x10] sm:$0xf]
    %v355 = vld [vmem:[#allocation12 + $0x14] sm:$0xf]
    %v356 = vld [vmem:[#allocation12 + $0x18] sm:$0xf]
    %v357 = vld [vmem:[#allocation12 + $0x1c] sm:$0xf]
    %v360 = vunpack.c.l.b16 %v348
    %v361 = vunpack.c.l.b16 %v349
    %v362 = vpack.c.b16 %v361, %v360
    %v371 = vunpack.c.l.b16 %v350
    %v372 = vunpack.c.l.b16 %v351
    %v373 = vunpack.c.l.b16 %v352
    %v374 = vunpack.c.l.b16 %v353
    %v375 = vunpack.c.l.b16 %v354
    %v376 = vunpack.c.l.b16 %v355
    %v377 = vunpack.c.l.b16 %v356
    %v378 = vunpack.c.l.b16 %v357
    %v379 = vpack.c.b16 %v372, %v371
    %v380 = vpack.c.b16 %v374, %v373
    %v381 = vpack.c.b16 %v376, %v375
    %v382 = vpack.c.b16 %v378, %v377
    %vm387 = vcmask 523264
    %v389 = vsel %vm387, %v362, 0
    %391 = vmatprep.subr.bf16.mxu0 0
    %392 = vmatpush1.bf16.msra.mxu0 0
    %393 = vmatprep.subr.bf16.mxu0 0
    %394 = vmatpush1.bf16.msra.mxu0 0
    %395 = vmatprep.subr.bf16.mxu0 0
    %396 = vmatpush1.bf16.msra.mxu0 0
    %397 = vmatprep.subr.bf16.mxu0 0
    %398 = vmatpush1.bf16.msra.mxu0 0
    %399 = vmatprep.subr.bf16.mxu0 0
    %400 = vmatpush1.bf16.msra.mxu0 %v382
    %401 = vmatprep.subr.bf16.mxu0 0
    %402 = vmatpush1.bf16.msra.mxu0 %v381
    %403 = vmatprep.subr.bf16.mxu0 0
    %404 = vmatpush1.bf16.msra.mxu0 %v380
    %405 = vmatprep.subr.bf16.mxu0 0
    %406 = vmatpush1.bf16.msra.mxu0 %v379
    %407 = vmatprep.subr.bf16.mxu0 0
    %408 = vmatpush2.bf16.msra.mxu0 0
    %409 = vmatprep.subr.bf16.mxu0 0
    %410 = vmatpush2.bf16.msra.mxu0 0
    %411 = vmatprep.subr.bf16.mxu0 0
    %412 = vmatpush2.bf16.msra.mxu0 0
    %413 = vmatprep.subr.bf16.mxu0 0
    %414 = vmatpush2.bf16.msra.mxu0 0
    %415 = vmatprep.subr.bf16.mxu0 0
    %416 = vmatpush2.bf16.msra.mxu0 0
    %417 = vmatprep.subr.bf16.mxu0 0
    %418 = vmatpush2.bf16.msra.mxu0 0
    %419 = vmatprep.subr.bf16.mxu0 0
    %420 = vmatpush2.bf16.msra.mxu0 0
    %421 = vmatprep.subr.bf16.mxu0 0
    %422 = vmatpush2.bf16.msra.mxu0 0
    %423 = vmatprep.mubr.bf16.mxu0 0
    %424 = vmatmul.mubr.bf16.gmra.mxu0 %v389
    %v425 = vpop.f32.mrf.mxu0
    %v426 = vadd.f32 0.0, %v425
    %v427 = vpop.f32.mrf.mxu0
    %v428 = vpop.f32.mrf.mxu0
    %v429 = vadd.f32 0.0, %v428
    %v430 = vpop.f32.mrf.mxu0
    %431 = vdwg.mxu0
    %432 = vst [vmem:[#allocation3] sm:$0xff] %v426
    %433 = vst [vmem:[#allocation3 + $0x8] sm:$0xff] %v429
    %v434 = vld [vmem:[#allocation15] sm:$0xf]
    %v435 = vld [vmem:[#allocation15 + $0x4] sm:$0xf]
    %v436 = vld [vmem:[#allocation15 + $0x8] sm:$0xf]
    %v437 = vld [vmem:[#allocation15 + $0xc] sm:$0xf]
    %v438 = vld [vmem:[#allocation3] sm:$0x3]
    %v439 = vadd.f32 %v438, %v345
    %v444 = vunpack.c.l.b16 %v434
    %v445 = vunpack.c.l.b16 %v435
    %v446 = vunpack.c.l.b16 %v436
    %v447 = vunpack.c.l.b16 %v437
    %v448 = vpack.c.b16 %v445, %v444
    %v449 = vpack.c.b16 %v447, %v446
    %vm452 = vcmask 261120
    %v454 = vsel %vm452, 0, 0
    %456 = vmatprep.subr.bf16.mxu0 0
    %457 = vmatpush1.bf16.msra.mxu0 0
    %458 = vmatprep.subr.bf16.mxu0 0
    %459 = vmatpush1.bf16.msra.mxu0 0
    %460 = vmatprep.subr.bf16.mxu0 0
    %461 = vmatpush1.bf16.msra.mxu0 0
    %462 = vmatprep.subr.bf16.mxu0 0
    %463 = vmatpush1.bf16.msra.mxu0 0
    %464 = vmatprep.subr.bf16.mxu0 0
    %465 = vmatpush1.bf16.msra.mxu0 0
    %466 = vmatprep.subr.bf16.mxu0 0
    %467 = vmatpush1.bf16.msra.mxu0 0
    %468 = vmatprep.subr.bf16.mxu0 0
    %469 = vmatpush1.bf16.msra.mxu0 %v449
    %470 = vmatprep.subr.bf16.mxu0 0
    %471 = vmatpush1.bf16.msra.mxu0 %v448
    %472 = vmatprep.subr.bf16.mxu0 0
    %473 = vmatpush2.bf16.msra.mxu0 0
    %474 = vmatprep.subr.bf16.mxu0 0
    %475 = vmatpush2.bf16.msra.mxu0 0
    %476 = vmatprep.subr.bf16.mxu0 0
    %477 = vmatpush2.bf16.msra.mxu0 0
    %478 = vmatprep.subr.bf16.mxu0 0
    %479 = vmatpush2.bf16.msra.mxu0 0
    %480 = vmatprep.subr.bf16.mxu0 0
    %481 = vmatpush2.bf16.msra.mxu0 0
    %482 = vmatprep.subr.bf16.mxu0 0
    %483 = vmatpush2.bf16.msra.mxu0 0
    %484 = vmatprep.subr.bf16.mxu0 0
    %485 = vmatpush2.bf16.msra.mxu0 0
    %486 = vmatprep.subr.bf16.mxu0 0
    %487 = vmatpush2.bf16.msra.mxu0 0
    %488 = vmatprep.mubr.bf16.mxu0 0
    %489 = vmatmul.mubr.bf16.gmra.mxu0 %v454
    %v490 = vpop.f32.mrf.mxu0
    %v491 = vadd.f32 0.0, %v490
    %v492 = vpop.f32.mrf.mxu0
    %v493 = vpop.f32.mrf.mxu0
    %v494 = vpop.f32.mrf.mxu0
    %495 = vdwg.mxu0
    %v496 = vadd.f32 %v439, %v491
    %v497 = vxor.u32 %v496, 2147483648
    %v498 = vmul.f32 %v497, 1.442695
    %v499 = vpow.pop %v498
    %v500 = vadd.f32 %v499, 1.0
    %v501 = vrcp.pop %v500
    %v502 = vmul.f32 1.0, %v501
    %v503 = vtanh.pop %v496
    %v504 = vmul.f32 %v502, 0.0
    %506 = vrot.lane.b32.xlu0 %v503, 64
    %v507 = vpop.permute.xlu0 %506
    %v509 = vmul.f32 %v502, %v507
    %511 = vrot.lane.b32.xlu0 %v509, 32
    %v512 = vpop.permute.xlu0 %511
    %v514 = vadd.f32 %v504, %v512
    %v515 = vtanh.pop %v514
    %517 = vrot.lane.b32.xlu0 %v515, 64
    %v518 = vpop.permute.xlu0 %517
    %v520 = vmul.f32 %v502, %v518
    %522 = vrot.lane.b32.xlu0 %v520, 32
    %v523 = vpop.permute.xlu0 %522
    %vm525 = vcmask 254976
    %526 = vst.msk [vmem:[#allocation2] sm:$0x3] %vm525, %v523
    %v527 = vld [vmem:[#allocation3 + $0x2] sm:$0x3]
    %v528 = vadd.f32 %v527, %v345
    %v529 = vpack.c.bf16 %v520, %v520
    %531 = vrot.lane.b32.xlu0 %v529, 32
    %v532 = vpop.permute.xlu0 %531
    %v534 = vsel %vm452, %v532, 0
    %536 = vmatprep.subr.bf16.mxu0 0
    %537 = vmatpush1.bf16.msra.mxu0 0
    %538 = vmatprep.subr.bf16.mxu0 0
    %539 = vmatpush1.bf16.msra.mxu0 0
    %540 = vmatprep.subr.bf16.mxu0 0
    %541 = vmatpush1.bf16.msra.mxu0 0
    %542 = vmatprep.subr.bf16.mxu0 0
    %543 = vmatpush1.bf16.msra.mxu0 0
    %544 = vmatprep.subr.bf16.mxu0 0
    %545 = vmatpush1.bf16.msra.mxu0 0
    %546 = vmatprep.subr.bf16.mxu0 0
    %547 = vmatpush1.bf16.msra.mxu0 0
    %548 = vmatprep.subr.bf16.mxu0 0
    %549 = vmatpush1.bf16.msra.mxu0 %v449
    %550 = vmatprep.subr.bf16.mxu0 0
    %551 = vmatpush1.bf16.msra.mxu0 %v448
    %552 = vmatprep.subr.bf16.mxu0 0
    %553 = vmatpush2.bf16.msra.mxu0 0
    %554 = vmatprep.subr.bf16.mxu0 0
    %555 = vmatpush2.bf16.msra.mxu0 0
    %556 = vmatprep.subr.bf16.mxu0 0
    %557 = vmatpush2.bf16.msra.mxu0 0
    %558 = vmatprep.subr.bf16.mxu0 0
    %559 = vmatpush2.bf16.msra.mxu0 0
    %560 = vmatprep.subr.bf16.mxu0 0
    %561 = vmatpush2.bf16.msra.mxu0 0
    %562 = vmatprep.subr.bf16.mxu0 0
    %563 = vmatpush2.bf16.msra.mxu0 0
    %564 = vmatprep.subr.bf16.mxu0 0
    %565 = vmatpush2.bf16.msra.mxu0 0
    %566 = vmatprep.subr.bf16.mxu0 0
    %567 = vmatpush2.bf16.msra.mxu0 0
    %568 = vmatprep.mubr.bf16.mxu0 0
    %569 = vmatmul.mubr.bf16.gmra.mxu0 %v534
    %v570 = vpop.f32.mrf.mxu0
    %v571 = vadd.f32 0.0, %v570
    %v572 = vpop.f32.mrf.mxu0
    %v573 = vpop.f32.mrf.mxu0
    %v574 = vpop.f32.mrf.mxu0
    %575 = vdwg.mxu0
    %v576 = vadd.f32 %v528, %v571
    %v577 = vxor.u32 %v576, 2147483648
    %v578 = vmul.f32 %v577, 1.442695
    %v579 = vpow.pop %v578
    %v580 = vadd.f32 %v579, 1.0
    %v581 = vrcp.pop %v580
    %v582 = vmul.f32 1.0, %v581
    %v583 = vtanh.pop %v576
    %v584 = vmul.f32 %v582, %v514
    %586 = vrot.lane.b32.xlu0 %v583, 64
    %v587 = vpop.permute.xlu0 %586
    %v589 = vmul.f32 %v582, %v587
    %591 = vrot.lane.b32.xlu0 %v589, 32
    %v592 = vpop.permute.xlu0 %591
    %v594 = vadd.f32 %v584, %v592
    %v595 = vtanh.pop %v594
    %597 = vrot.lane.b32.xlu0 %v595, 64
    %v598 = vpop.permute.xlu0 %597
    %v600 = vmul.f32 %v582, %v598
    %602 = vrot.lane.b32.xlu0 %v600, 32
    %v603 = vpop.permute.xlu0 %602
    %605 = vst.msk [vmem:[#allocation2 + $0x2] sm:$0x3] %vm525, %v603
    %v606 = vld [vmem:[#allocation3 + $0x4] sm:$0x3]
    %v607 = vadd.f32 %v606, %v345
    %v608 = vpack.c.bf16 %v600, %v600
    %610 = vrot.lane.b32.xlu0 %v608, 32
    %v611 = vpop.permute.xlu0 %610
    %v613 = vsel %vm452, %v611, 0
    %615 = vmatprep.subr.bf16.mxu0 0
    %616 = vmatpush1.bf16.msra.mxu0 0
    %617 = vmatprep.subr.bf16.mxu0 0
    %618 = vmatpush1.bf16.msra.mxu0 0
    %619 = vmatprep.subr.bf16.mxu0 0
    %620 = vmatpush1.bf16.msra.mxu0 0
    %621 = vmatprep.subr.bf16.mxu0 0
    %622 = vmatpush1.bf16.msra.mxu0 0
    %623 = vmatprep.subr.bf16.mxu0 0
    %624 = vmatpush1.bf16.msra.mxu0 0
    %625 = vmatprep.subr.bf16.mxu0 0
    %626 = vmatpush1.bf16.msra.mxu0 0
    %627 = vmatprep.subr.bf16.mxu0 0
    %628 = vmatpush1.bf16.msra.mxu0 %v449
    %629 = vmatprep.subr.bf16.mxu0 0
    %630 = vmatpush1.bf16.msra.mxu0 %v448
    %631 = vmatprep.subr.bf16.mxu0 0
    %632 = vmatpush2.bf16.msra.mxu0 0
    %633 = vmatprep.subr.bf16.mxu0 0
    %634 = vmatpush2.bf16.msra.mxu0 0
    %635 = vmatprep.subr.bf16.mxu0 0
    %636 = vmatpush2.bf16.msra.mxu0 0
    %637 = vmatprep.subr.bf16.mxu0 0
    %638 = vmatpush2.bf16.msra.mxu0 0
    %639 = vmatprep.subr.bf16.mxu0 0
    %640 = vmatpush2.bf16.msra.mxu0 0
    %641 = vmatprep.subr.bf16.mxu0 0
    %642 = vmatpush2.bf16.msra.mxu0 0
    %643 = vmatprep.subr.bf16.mxu0 0
    %644 = vmatpush2.bf16.msra.mxu0 0
    %645 = vmatprep.subr.bf16.mxu0 0
    %646 = vmatpush2.bf16.msra.mxu0 0
    %647 = vmatprep.mubr.bf16.mxu0 0
    %648 = vmatmul.mubr.bf16.gmra.mxu0 %v613
    %v649 = vpop.f32.mrf.mxu0
    %v650 = vadd.f32 0.0, %v649
    %v651 = vpop.f32.mrf.mxu0
    %v652 = vpop.f32.mrf.mxu0
    %v653 = vpop.f32.mrf.mxu0
    %654 = vdwg.mxu0
    %v655 = vadd.f32 %v607, %v650
    %v656 = vxor.u32 %v655, 2147483648
    %v657 = vmul.f32 %v656, 1.442695
    %v658 = vpow.pop %v657
    %v659 = vadd.f32 %v658, 1.0
    %v660 = vrcp.pop %v659
    %v661 = vmul.f32 1.0, %v660
    %v662 = vtanh.pop %v655
    %v663 = vmul.f32 %v661, %v594
    %665 = vrot.lane.b32.xlu0 %v662, 64
    %v666 = vpop.permute.xlu0 %665
    %v668 = vmul.f32 %v661, %v666
    %670 = vrot.lane.b32.xlu0 %v668, 32
    %v671 = vpop.permute.xlu0 %670
    %v673 = vadd.f32 %v663, %v671
    %v674 = vtanh.pop %v673
    %676 = vrot.lane.b32.xlu0 %v674, 64
    %v677 = vpop.permute.xlu0 %676
    %v679 = vmul.f32 %v661, %v677
    %681 = vrot.lane.b32.xlu0 %v679, 32
    %v682 = vpop.permute.xlu0 %681
    %684 = vst.msk [vmem:[#allocation2 + $0x4] sm:$0x3] %vm525, %v682
    %v685 = vld [vmem:[#allocation3 + $0x6] sm:$0x3]
    %v686 = vadd.f32 %v685, %v345
    %v687 = vpack.c.bf16 %v679, %v679
    %689 = vrot.lane.b32.xlu0 %v687, 32
    %v690 = vpop.permute.xlu0 %689
    %v692 = vsel %vm452, %v690, 0
    %694 = vmatprep.subr.bf16.mxu0 0
    %695 = vmatpush1.bf16.msra.mxu0 0
    %696 = vmatprep.subr.bf16.mxu0 0
    %697 = vmatpush1.bf16.msra.mxu0 0
    %698 = vmatprep.subr.bf16.mxu0 0
    %699 = vmatpush1.bf16.msra.mxu0 0
    %700 = vmatprep.subr.bf16.mxu0 0
    %701 = vmatpush1.bf16.msra.mxu0 0
    %702 = vmatprep.subr.bf16.mxu0 0
    %703 = vmatpush1.bf16.msra.mxu0 0
    %704 = vmatprep.subr.bf16.mxu0 0
    %705 = vmatpush1.bf16.msra.mxu0 0
    %706 = vmatprep.subr.bf16.mxu0 0
    %707 = vmatpush1.bf16.msra.mxu0 %v449
    %708 = vmatprep.subr.bf16.mxu0 0
    %709 = vmatpush1.bf16.msra.mxu0 %v448
    %710 = vmatprep.subr.bf16.mxu0 0
    %711 = vmatpush2.bf16.msra.mxu0 0
    %712 = vmatprep.subr.bf16.mxu0 0
    %713 = vmatpush2.bf16.msra.mxu0 0
    %714 = vmatprep.subr.bf16.mxu0 0
    %715 = vmatpush2.bf16.msra.mxu0 0
    %716 = vmatprep.subr.bf16.mxu0 0
    %717 = vmatpush2.bf16.msra.mxu0 0
    %718 = vmatprep.subr.bf16.mxu0 0
    %719 = vmatpush2.bf16.msra.mxu0 0
    %720 = vmatprep.subr.bf16.mxu0 0
    %721 = vmatpush2.bf16.msra.mxu0 0
    %722 = vmatprep.subr.bf16.mxu0 0
    %723 = vmatpush2.bf16.msra.mxu0 0
    %724 = vmatprep.subr.bf16.mxu0 0
    %725 = vmatpush2.bf16.msra.mxu0 0
    %726 = vmatprep.mubr.bf16.mxu0 0
    %727 = vmatmul.mubr.bf16.gmra.mxu0 %v692
    %v728 = vpop.f32.mrf.mxu0
    %v729 = vadd.f32 0.0, %v728
    %v730 = vpop.f32.mrf.mxu0
    %v731 = vpop.f32.mrf.mxu0
    %v732 = vpop.f32.mrf.mxu0
    %733 = vdwg.mxu0
    %v734 = vadd.f32 %v686, %v729
    %v735 = vxor.u32 %v734, 2147483648
    %v736 = vmul.f32 %v735, 1.442695
    %v737 = vpow.pop %v736
    %v738 = vadd.f32 %v737, 1.0
    %v739 = vrcp.pop %v738
    %v740 = vmul.f32 1.0, %v739
    %v741 = vtanh.pop %v734
    %v742 = vmul.f32 %v740, %v673
    %744 = vrot.lane.b32.xlu0 %v741, 64
    %v745 = vpop.permute.xlu0 %744
    %v747 = vmul.f32 %v740, %v745
    %749 = vrot.lane.b32.xlu0 %v747, 32
    %v750 = vpop.permute.xlu0 %749
    %v752 = vadd.f32 %v742, %v750
    %v753 = vtanh.pop %v752
    %755 = vrot.lane.b32.xlu0 %v753, 64
    %v756 = vpop.permute.xlu0 %755
    %v758 = vmul.f32 %v740, %v756
    %760 = vrot.lane.b32.xlu0 %v758, 32
    %v761 = vpop.permute.xlu0 %760
    %763 = vst.msk [vmem:[#allocation2 + $0x6] sm:$0x3] %vm525, %v761
    %v764 = vld [vmem:[#allocation3 + $0x8] sm:$0x3]
    %v765 = vadd.f32 %v764, %v345
    %v766 = vpack.c.bf16 %v758, %v758
    %768 = vrot.lane.b32.xlu0 %v766, 32
    %v769 = vpop.permute.xlu0 %768
    %v771 = vsel %vm452, %v769, 0
    %773 = vmatprep.subr.bf16.mxu0 0
    %774 = vmatpush1.bf16.msra.mxu0 0
    %775 = vmatprep.subr.bf16.mxu0 0
    %776 = vmatpush1.bf16.msra.mxu0 0
    %777 = vmatprep.subr.bf16.mxu0 0
    %778 = vmatpush1.bf16.msra.mxu0 0
    %779 = vmatprep.subr.bf16.mxu0 0
    %780 = vmatpush1.bf16.msra.mxu0 0
    %781 = vmatprep.subr.bf16.mxu0 0
    %782 = vmatpush1.bf16.msra.mxu0 0
    %783 = vmatprep.subr.bf16.mxu0 0
    %784 = vmatpush1.bf16.msra.mxu0 0
    %785 = vmatprep.subr.bf16.mxu0 0
    %786 = vmatpush1.bf16.msra.mxu0 %v449
    %787 = vmatprep.subr.bf16.mxu0 0
    %788 = vmatpush1.bf16.msra.mxu0 %v448
    %789 = vmatprep.subr.bf16.mxu0 0
    %790 = vmatpush2.bf16.msra.mxu0 0
    %791 = vmatprep.subr.bf16.mxu0 0
    %792 = vmatpush2.bf16.msra.mxu0 0
    %793 = vmatprep.subr.bf16.mxu0 0
    %794 = vmatpush2.bf16.msra.mxu0 0
    %795 = vmatprep.subr.bf16.mxu0 0
    %796 = vmatpush2.bf16.msra.mxu0 0
    %797 = vmatprep.subr.bf16.mxu0 0
    %798 = vmatpush2.bf16.msra.mxu0 0
    %799 = vmatprep.subr.bf16.mxu0 0
    %800 = vmatpush2.bf16.msra.mxu0 0
    %801 = vmatprep.subr.bf16.mxu0 0
    %802 = vmatpush2.bf16.msra.mxu0 0
    %803 = vmatprep.subr.bf16.mxu0 0
    %804 = vmatpush2.bf16.msra.mxu0 0
    %805 = vmatprep.mubr.bf16.mxu0 0
    %806 = vmatmul.mubr.bf16.gmra.mxu0 %v771
    %v807 = vpop.f32.mrf.mxu0
    %v808 = vadd.f32 0.0, %v807
    %v809 = vpop.f32.mrf.mxu0
    %v810 = vpop.f32.mrf.mxu0
    %v811 = vpop.f32.mrf.mxu0
    %812 = vdwg.mxu0
    %v813 = vadd.f32 %v765, %v808
    %v814 = vxor.u32 %v813, 2147483648
    %v815 = vmul.f32 %v814, 1.442695
    %v816 = vpow.pop %v815
    %v817 = vadd.f32 %v816, 1.0
    %v818 = vrcp.pop %v817
    %v819 = vmul.f32 1.0, %v818
    %v820 = vtanh.pop %v813
    %v821 = vmul.f32 %v819, %v752
    %823 = vrot.lane.b32.xlu0 %v820, 64
    %v824 = vpop.permute.xlu0 %823
    %v826 = vmul.f32 %v819, %v824
    %828 = vrot.lane.b32.xlu0 %v826, 32
    %v829 = vpop.permute.xlu0 %828
    %v831 = vadd.f32 %v821, %v829
    %v832 = vtanh.pop %v831
    %834 = vrot.lane.b32.xlu0 %v832, 64
    %v835 = vpop.permute.xlu0 %834
    %v837 = vmul.f32 %v819, %v835
    %839 = vrot.lane.b32.xlu0 %v837, 32
    %v840 = vpop.permute.xlu0 %839
    %842 = vst.msk [vmem:[#allocation2 + $0x8] sm:$0x3] %vm525, %v840
    %v843 = vld [vmem:[#allocation3 + $0xa] sm:$0x3]
    %v844 = vadd.f32 %v843, %v345
    %v845 = vpack.c.bf16 %v837, %v837
    %847 = vrot.lane.b32.xlu0 %v845, 32
    %v848 = vpop.permute.xlu0 %847
    %v850 = vsel %vm452, %v848, 0
    %852 = vmatprep.subr.bf16.mxu0 0
    %853 = vmatpush1.bf16.msra.mxu0 0
    %854 = vmatprep.subr.bf16.mxu0 0
    %855 = vmatpush1.bf16.msra.mxu0 0
    %856 = vmatprep.subr.bf16.mxu0 0
    %857 = vmatpush1.bf16.msra.mxu0 0
    %858 = vmatprep.subr.bf16.mxu0 0
    %859 = vmatpush1.bf16.msra.mxu0 0
    %860 = vmatprep.subr.bf16.mxu0 0
    %861 = vmatpush1.bf16.msra.mxu0 0
    %862 = vmatprep.subr.bf16.mxu0 0
    %863 = vmatpush1.bf16.msra.mxu0 0
    %864 = vmatprep.subr.bf16.mxu0 0
    %865 = vmatpush1.bf16.msra.mxu0 %v449
    %866 = vmatprep.subr.bf16.mxu0 0
    %867 = vmatpush1.bf16.msra.mxu0 %v448
    %868 = vmatprep.subr.bf16.mxu0 0
    %869 = vmatpush2.bf16.msra.mxu0 0
    %870 = vmatprep.subr.bf16.mxu0 0
    %871 = vmatpush2.bf16.msra.mxu0 0
    %872 = vmatprep.subr.bf16.mxu0 0
    %873 = vmatpush2.bf16.msra.mxu0 0
    %874 = vmatprep.subr.bf16.mxu0 0
    %875 = vmatpush2.bf16.msra.mxu0 0
    %876 = vmatprep.subr.bf16.mxu0 0
    %877 = vmatpush2.bf16.msra.mxu0 0
    %878 = vmatprep.subr.bf16.mxu0 0
    %879 = vmatpush2.bf16.msra.mxu0 0
    %880 = vmatprep.subr.bf16.mxu0 0
    %881 = vmatpush2.bf16.msra.mxu0 0
    %882 = vmatprep.subr.bf16.mxu0 0
    %883 = vmatpush2.bf16.msra.mxu0 0
    %884 = vmatprep.mubr.bf16.mxu0 0
    %885 = vmatmul.mubr.bf16.gmra.mxu0 %v850
    %v886 = vpop.f32.mrf.mxu0
    %v887 = vadd.f32 0.0, %v886
    %v888 = vpop.f32.mrf.mxu0
    %v889 = vpop.f32.mrf.mxu0
    %v890 = vpop.f32.mrf.mxu0
    %891 = vdwg.mxu0
    %v892 = vadd.f32 %v844, %v887
    %v893 = vxor.u32 %v892, 2147483648
    %v894 = vmul.f32 %v893, 1.442695
    %v895 = vpow.pop %v894
    %v896 = vadd.f32 %v895, 1.0
    %v897 = vrcp.pop %v896
    %v898 = vmul.f32 1.0, %v897
    %v899 = vtanh.pop %v892
    %v900 = vmul.f32 %v898, %v831
    %902 = vrot.lane.b32.xlu0 %v899, 64
    %v903 = vpop.permute.xlu0 %902
    %v905 = vmul.f32 %v898, %v903
    %907 = vrot.lane.b32.xlu0 %v905, 32
    %v908 = vpop.permute.xlu0 %907
    %v910 = vadd.f32 %v900, %v908
    %v911 = vtanh.pop %v910
    %913 = vrot.lane.b32.xlu0 %v911, 64
    %v914 = vpop.permute.xlu0 %913
    %v916 = vmul.f32 %v898, %v914
    %918 = vrot.lane.b32.xlu0 %v916, 32
    %v919 = vpop.permute.xlu0 %918
    %921 = vst.msk [vmem:[#allocation2 + $0xa] sm:$0x3] %vm525, %v919
    %v922 = vld [vmem:[#allocation3 + $0xc] sm:$0x3]
    %v923 = vadd.f32 %v922, %v345
    %v924 = vpack.c.bf16 %v916, %v916
    %926 = vrot.lane.b32.xlu0 %v924, 32
    %v927 = vpop.permute.xlu0 %926
    %v929 = vsel %vm452, %v927, 0
    %931 = vmatprep.subr.bf16.mxu0 0
    %932 = vmatpush1.bf16.msra.mxu0 0
    %933 = vmatprep.subr.bf16.mxu0 0
    %934 = vmatpush1.bf16.msra.mxu0 0
    %935 = vmatprep.subr.bf16.mxu0 0
    %936 = vmatpush1.bf16.msra.mxu0 0
    %937 = vmatprep.subr.bf16.mxu0 0
    %938 = vmatpush1.bf16.msra.mxu0 0
    %939 = vmatprep.subr.bf16.mxu0 0
    %940 = vmatpush1.bf16.msra.mxu0 0
    %941 = vmatprep.subr.bf16.mxu0 0
    %942 = vmatpush1.bf16.msra.mxu0 0
    %943 = vmatprep.subr.bf16.mxu0 0
    %944 = vmatpush1.bf16.msra.mxu0 %v449
    %945 = vmatprep.subr.bf16.mxu0 0
    %946 = vmatpush1.bf16.msra.mxu0 %v448
    %947 = vmatprep.subr.bf16.mxu0 0
    %948 = vmatpush2.bf16.msra.mxu0 0
    %949 = vmatprep.subr.bf16.mxu0 0
    %950 = vmatpush2.bf16.msra.mxu0 0
    %951 = vmatprep.subr.bf16.mxu0 0
    %952 = vmatpush2.bf16.msra.mxu0 0
    %953 = vmatprep.subr.bf16.mxu0 0
    %954 = vmatpush2.bf16.msra.mxu0 0
    %955 = vmatprep.subr.bf16.mxu0 0
    %956 = vmatpush2.bf16.msra.mxu0 0
    %957 = vmatprep.subr.bf16.mxu0 0
    %958 = vmatpush2.bf16.msra.mxu0 0
    %959 = vmatprep.subr.bf16.mxu0 0
    %960 = vmatpush2.bf16.msra.mxu0 0
    %961 = vmatprep.subr.bf16.mxu0 0
    %962 = vmatpush2.bf16.msra.mxu0 0
    %963 = vmatprep.mubr.bf16.mxu0 0
    %964 = vmatmul.mubr.bf16.gmra.mxu0 %v929
    %v965 = vpop.f32.mrf.mxu0
    %v966 = vadd.f32 0.0, %v965
    %v967 = vpop.f32.mrf.mxu0
    %v968 = vpop.f32.mrf.mxu0
    %v969 = vpop.f32.mrf.mxu0
    %970 = vdwg.mxu0
    %v971 = vadd.f32 %v923, %v966
    %v972 = vxor.u32 %v971, 2147483648
    %v973 = vmul.f32 %v972, 1.442695
    %v974 = vpow.pop %v973
    %v975 = vadd.f32 %v974, 1.0
    %v976 = vrcp.pop %v975
    %v977 = vmul.f32 1.0, %v976
    %v978 = vtanh.pop %v971
    %v979 = vmul.f32 %v977, %v910
    %981 = vrot.lane.b32.xlu0 %v978, 64
    %v982 = vpop.permute.xlu0 %981
    %v984 = vmul.f32 %v977, %v982
    %986 = vrot.lane.b32.xlu0 %v984, 32
    %v987 = vpop.permute.xlu0 %986
    %v989 = vadd.f32 %v979, %v987
    %v990 = vtanh.pop %v989
    %992 = vrot.lane.b32.xlu0 %v990, 64
    %v993 = vpop.permute.xlu0 %992
    %v995 = vmul.f32 %v977, %v993
    %997 = vrot.lane.b32.xlu0 %v995, 32
    %v998 = vpop.permute.xlu0 %997
    %1000 = vst.msk [vmem:[#allocation2 + $0xc] sm:$0x3] %vm525, %v998
    %v1001 = vld [vmem:[#allocation3 + $0xe] sm:$0x3]
    %v1002 = vadd.f32 %v1001, %v345
    %v1003 = vpack.c.bf16 %v995, %v995
    %1005 = vrot.lane.b32.xlu0 %v1003, 32
    %v1006 = vpop.permute.xlu0 %1005
    %v1008 = vsel %vm452, %v1006, 0
    %1010 = vmatprep.subr.bf16.mxu0 0
    %1011 = vmatpush1.bf16.msra.mxu0 0
    %1012 = vmatprep.subr.bf16.mxu0 0
    %1013 = vmatpush1.bf16.msra.mxu0 0
    %1014 = vmatprep.subr.bf16.mxu0 0
    %1015 = vmatpush1.bf16.msra.mxu0 0
    %1016 = vmatprep.subr.bf16.mxu0 0
    %1017 = vmatpush1.bf16.msra.mxu0 0
    %1018 = vmatprep.subr.bf16.mxu0 0
    %1019 = vmatpush1.bf16.msra.mxu0 0
    %1020 = vmatprep.subr.bf16.mxu0 0
    %1021 = vmatpush1.bf16.msra.mxu0 0
    %1022 = vmatprep.subr.bf16.mxu0 0
    %1023 = vmatpush1.bf16.msra.mxu0 %v449
    %1024 = vmatprep.subr.bf16.mxu0 0
    %1025 = vmatpush1.bf16.msra.mxu0 %v448
    %1026 = vmatprep.subr.bf16.mxu0 0
    %1027 = vmatpush2.bf16.msra.mxu0 0
    %1028 = vmatprep.subr.bf16.mxu0 0
    %1029 = vmatpush2.bf16.msra.mxu0 0
    %1030 = vmatprep.subr.bf16.mxu0 0
    %1031 = vmatpush2.bf16.msra.mxu0 0
    %1032 = vmatprep.subr.bf16.mxu0 0
    %1033 = vmatpush2.bf16.msra.mxu0 0
    %1034 = vmatprep.subr.bf16.mxu0 0
    %1035 = vmatpush2.bf16.msra.mxu0 0
    %1036 = vmatprep.subr.bf16.mxu0 0
    %1037 = vmatpush2.bf16.msra.mxu0 0
    %1038 = vmatprep.subr.bf16.mxu0 0
    %1039 = vmatpush2.bf16.msra.mxu0 0
    %1040 = vmatprep.subr.bf16.mxu0 0
    %1041 = vmatpush2.bf16.msra.mxu0 0
    %1042 = vmatprep.mubr.bf16.mxu0 0
    %1043 = vmatmul.mubr.bf16.gmra.mxu0 %v1008
    %v1044 = vpop.f32.mrf.mxu0
    %v1045 = vadd.f32 0.0, %v1044
    %v1046 = vpop.f32.mrf.mxu0
    %v1047 = vpop.f32.mrf.mxu0
    %v1048 = vpop.f32.mrf.mxu0
    %1049 = vdwg.mxu0
    %v1050 = vadd.f32 %v1002, %v1045
    %v1051 = vxor.u32 %v1050, 2147483648
    %v1052 = vmul.f32 %v1051, 1.442695
    %v1053 = vpow.pop %v1052
    %v1054 = vadd.f32 %v1053, 1.0
    %v1055 = vrcp.pop %v1054
    %v1056 = vmul.f32 1.0, %v1055
    %v1057 = vtanh.pop %v1050
    %v1058 = vmul.f32 %v1056, %v989
    %1060 = vrot.lane.b32.xlu0 %v1057, 64
    %v1061 = vpop.permute.xlu0 %1060
    %v1063 = vmul.f32 %v1056, %v1061
    %1065 = vrot.lane.b32.xlu0 %v1063, 32
    %v1066 = vpop.permute.xlu0 %1065
    %v1068 = vadd.f32 %v1058, %v1066
    %v1069 = vtanh.pop %v1068
    %1071 = vrot.lane.b32.xlu0 %v1069, 64
    %v1072 = vpop.permute.xlu0 %1071
    %v1074 = vmul.f32 %v1056, %v1072
    %1076 = vrot.lane.b32.xlu0 %v1074, 32
    %v1077 = vpop.permute.xlu0 %1076
    %1079 = vst.msk [vmem:[#allocation2 + $0xe] sm:$0x3] %vm525, %v1077
    %1080 = vst.msk [vmem:[#allocation22] sm:$0x3] %vm525, %v1077
    %1082 = vrot.lane.b32.xlu0 %v1068, 96
    %v1083 = vpop.permute.xlu0 %1082
    %1085 = vst.msk [vmem:[#allocation24] sm:$0x3] %vm525, %v1083
    %v1086 = vld [vmem:[%s9] sm:$0xf]
    %v1087 = vld [vmem:[%s9 + $0x4] sm:$0xf]
    %v1088 = vld [vmem:[%s9 + $0x8] sm:$0xf]
    %v1089 = vld [vmem:[%s9 + $0xc] sm:$0xf]
    %v1090 = vld [vmem:[#allocation2] sm:$0xff]
    %v1091 = vld [vmem:[#allocation2 + $0x8] sm:$0xff]
    %v1092 = vpack.c.bf16 %v1091, %v1090
    %v1093 = vld [vmem:[#allocation18] sm:$0xf]
    %v1094 = vld [vmem:[#allocation18 + $0x4] sm:$0xf]
    %v1095 = vld [vmem:[#allocation18 + $0x8] sm:$0xf]
    %v1096 = vld [vmem:[#allocation18 + $0xc] sm:$0xf]
    %v1097 = vld [vmem:[%s10] sm:$0x1]
    %v1099 = vlaneseq
    %v1100 = vshrl.u32 %v1099, 7
    %v1101 = vsub.s32 0, %v1100
    %v1102 = vrot.slane %v1097, %v1101
    %v1108 = vunpack.c.l.b16 %v1093
    %v1109 = vunpack.c.l.b16 %v1094
    %v1110 = vunpack.c.l.b16 %v1095
    %v1111 = vunpack.c.l.b16 %v1096
    %v1112 = vpack.c.b16 %v1109, %v1108
    %v1113 = vpack.c.b16 %v1111, %v1110
    %v1117 = vsel %vm452, %v1092, 0
    %1119 = vmatprep.subr.bf16.mxu0 0
    %1120 = vmatpush1.bf16.msra.mxu0 0
    %1121 = vmatprep.subr.bf16.mxu0 0
    %1122 = vmatpush1.bf16.msra.mxu0 0
    %1123 = vmatprep.subr.bf16.mxu0 0
    %1124 = vmatpush1.bf16.msra.mxu0 0
    %1125 = vmatprep.subr.bf16.mxu0 0
    %1126 = vmatpush1.bf16.msra.mxu0 0
    %1127 = vmatprep.subr.bf16.mxu0 0
    %1128 = vmatpush1.bf16.msra.mxu0 0
    %1129 = vmatprep.subr.bf16.mxu0 0
    %1130 = vmatpush1.bf16.msra.mxu0 0
    %1131 = vmatprep.subr.bf16.mxu0 0
    %1132 = vmatpush1.bf16.msra.mxu0 %v1113
    %1133 = vmatprep.subr.bf16.mxu0 0
    %1134 = vmatpush1.bf16.msra.mxu0 %v1112
    %1135 = vmatprep.subr.bf16.mxu0 0
    %1136 = vmatpush2.bf16.msra.mxu0 0
    %1137 = vmatprep.subr.bf16.mxu0 0
    %1138 = vmatpush2.bf16.msra.mxu0 0
    %1139 = vmatprep.subr.bf16.mxu0 0
    %1140 = vmatpush2.bf16.msra.mxu0 0
    %1141 = vmatprep.subr.bf16.mxu0 0
    %1142 = vmatpush2.bf16.msra.mxu0 0
    %1143 = vmatprep.subr.bf16.mxu0 0
    %1144 = vmatpush2.bf16.msra.mxu0 0
    %1145 = vmatprep.subr.bf16.mxu0 0
    %1146 = vmatpush2.bf16.msra.mxu0 0
    %1147 = vmatprep.subr.bf16.mxu0 0
    %1148 = vmatpush2.bf16.msra.mxu0 0
    %1149 = vmatprep.subr.bf16.mxu0 0
    %1150 = vmatpush2.bf16.msra.mxu0 0
    %1151 = vmatprep.mubr.bf16.mxu0 0
    %1152 = vmatmul.mubr.bf16.gmra.mxu0 %v1117
    %v1153 = vpop.f32.mrf.mxu0
    %v1154 = vadd.f32 %v1102, %v1153
    %v1155 = vpop.f32.mrf.mxu0
    %v1156 = vpop.f32.mrf.mxu0
    %v1157 = vadd.f32 %v1102, %v1156
    %v1158 = vpop.f32.mrf.mxu0
    %1159 = vdwg.mxu0
    %1160 = vst [vmem:[#allocation3] sm:$0xff] %v1154
    %1161 = vst [vmem:[#allocation3 + $0x8] sm:$0xff] %v1157
    %v1162 = vld [vmem:[#allocation3] sm:$0x3]
    %v1167 = vunpack.c.l.b16 %v1086
    %v1168 = vunpack.c.l.b16 %v1087
    %v1169 = vunpack.c.l.b16 %v1088
    %v1170 = vunpack.c.l.b16 %v1089
    %v1171 = vpack.c.b16 %v1168, %v1167
    %v1172 = vpack.c.b16 %v1170, %v1169
    %1175 = vmatprep.subr.bf16.mxu0 0
    %1176 = vmatpush1.bf16.msra.mxu0 0
    %1177 = vmatprep.subr.bf16.mxu0 0
    %1178 = vmatpush1.bf16.msra.mxu0 0
    %1179 = vmatprep.subr.bf16.mxu0 0
    %1180 = vmatpush1.bf16.msra.mxu0 0
    %1181 = vmatprep.subr.bf16.mxu0 0
    %1182 = vmatpush1.bf16.msra.mxu0 0
    %1183 = vmatprep.subr.bf16.mxu0 0
    %1184 = vmatpush1.bf16.msra.mxu0 0
    %1185 = vmatprep.subr.bf16.mxu0 0
    %1186 = vmatpush1.bf16.msra.mxu0 0
    %1187 = vmatprep.subr.bf16.mxu0 0
    %1188 = vmatpush1.bf16.msra.mxu0 %v1172
    %1189 = vmatprep.subr.bf16.mxu0 0
    %1190 = vmatpush1.bf16.msra.mxu0 %v1171
    %1191 = vmatprep.subr.bf16.mxu0 0
    %1192 = vmatpush2.bf16.msra.mxu0 0
    %1193 = vmatprep.subr.bf16.mxu0 0
    %1194 = vmatpush2.bf16.msra.mxu0 0
    %1195 = vmatprep.subr.bf16.mxu0 0
    %1196 = vmatpush2.bf16.msra.mxu0 0
    %1197 = vmatprep.subr.bf16.mxu0 0
    %1198 = vmatpush2.bf16.msra.mxu0 0
    %1199 = vmatprep.subr.bf16.mxu0 0
    %1200 = vmatpush2.bf16.msra.mxu0 0
    %1201 = vmatprep.subr.bf16.mxu0 0
    %1202 = vmatpush2.bf16.msra.mxu0 0
    %1203 = vmatprep.subr.bf16.mxu0 0
    %1204 = vmatpush2.bf16.msra.mxu0 0
    %1205 = vmatprep.subr.bf16.mxu0 0
    %1206 = vmatpush2.bf16.msra.mxu0 0
    %1207 = vmatprep.mubr.bf16.mxu0 0
    %1208 = vmatmul.mubr.bf16.gmra.mxu0 %v454
    %v1209 = vpop.f32.mrf.mxu0
    %v1210 = vadd.f32 0.0, %v1209
    %v1211 = vpop.f32.mrf.mxu0
    %v1212 = vpop.f32.mrf.mxu0
    %v1213 = vpop.f32.mrf.mxu0
    %1214 = vdwg.mxu0
    %v1215 = vadd.f32 %v1162, %v1210
    %v1216 = vxor.u32 %v1215, 2147483648
    %v1217 = vmul.f32 %v1216, 1.442695
    %v1218 = vpow.pop %v1217
    %v1219 = vadd.f32 %v1218, 1.0
    %v1220 = vrcp.pop %v1219
    %v1221 = vmul.f32 1.0, %v1220
    %v1222 = vtanh.pop %v1215
    %v1223 = vmul.f32 %v1221, 0.0
    %1225 = vrot.lane.b32.xlu0 %v1222, 64
    %v1226 = vpop.permute.xlu0 %1225
    %v1228 = vmul.f32 %v1221, %v1226
    %1230 = vrot.lane.b32.xlu0 %v1228, 32
    %v1231 = vpop.permute.xlu0 %1230
    %v1233 = vadd.f32 %v1223, %v1231
    %v1234 = vtanh.pop %v1233
    %1236 = vrot.lane.b32.xlu0 %v1234, 64
    %v1237 = vpop.permute.xlu0 %1236
    %v1239 = vmul.f32 %v1221, %v1237
    %1241 = vrot.lane.b32.xlu0 %v1239, 32
    %v1242 = vpop.permute.xlu0 %1241
    %1244 = vst.msk [vmem:[#allocation2] sm:$0x3] %vm525, %v1242
    %v1245 = vld [vmem:[#allocation3 + $0x2] sm:$0x3]
    %v1246 = vpack.c.bf16 %v1239, %v1239
    %1248 = vrot.lane.b32.xlu0 %v1246, 32
    %v1249 = vpop.permute.xlu0 %1248
    %v1251 = vsel %vm452, %v1249, 0
    %1253 = vmatprep.subr.bf16.mxu0 0
    %1254 = vmatpush1.bf16.msra.mxu0 0
    %1255 = vmatprep.subr.bf16.mxu0 0
    %1256 = vmatpush1.bf16.msra.mxu0 0
    %1257 = vmatprep.subr.bf16.mxu0 0
    %1258 = vmatpush1.bf16.msra.mxu0 0
    %1259 = vmatprep.subr.bf16.mxu0 0
    %1260 = vmatpush1.bf16.msra.mxu0 0
    %1261 = vmatprep.subr.bf16.mxu0 0
    %1262 = vmatpush1.bf16.msra.mxu0 0
    %1263 = vmatprep.subr.bf16.mxu0 0
    %1264 = vmatpush1.bf16.msra.mxu0 0
    %1265 = vmatprep.subr.bf16.mxu0 0
    %1266 = vmatpush1.bf16.msra.mxu0 %v1172
    %1267 = vmatprep.subr.bf16.mxu0 0
    %1268 = vmatpush1.bf16.msra.mxu0 %v1171
    %1269 = vmatprep.subr.bf16.mxu0 0
    %1270 = vmatpush2.bf16.msra.mxu0 0
    %1271 = vmatprep.subr.bf16.mxu0 0
    %1272 = vmatpush2.bf16.msra.mxu0 0
    %1273 = vmatprep.subr.bf16.mxu0 0
    %1274 = vmatpush2.bf16.msra.mxu0 0
    %1275 = vmatprep.subr.bf16.mxu0 0
    %1276 = vmatpush2.bf16.msra.mxu0 0
    %1277 = vmatprep.subr.bf16.mxu0 0
    %1278 = vmatpush2.bf16.msra.mxu0 0
    %1279 = vmatprep.subr.bf16.mxu0 0
    %1280 = vmatpush2.bf16.msra.mxu0 0
    %1281 = vmatprep.subr.bf16.mxu0 0
    %1282 = vmatpush2.bf16.msra.mxu0 0
    %1283 = vmatprep.subr.bf16.mxu0 0
    %1284 = vmatpush2.bf16.msra.mxu0 0
    %1285 = vmatprep.mubr.bf16.mxu0 0
    %1286 = vmatmul.mubr.bf16.gmra.mxu0 %v1251
    %v1287 = vpop.f32.mrf.mxu0
    %v1288 = vadd.f32 0.0, %v1287
    %v1289 = vpop.f32.mrf.mxu0
    %v1290 = vpop.f32.mrf.mxu0
    %v1291 = vpop.f32.mrf.mxu0
    %1292 = vdwg.mxu0
    %v1293 = vadd.f32 %v1245, %v1288
    %v1294 = vxor.u32 %v1293, 2147483648
    %v1295 = vmul.f32 %v1294, 1.442695
    %v1296 = vpow.pop %v1295
    %v1297 = vadd.f32 %v1296, 1.0
    %v1298 = vrcp.pop %v1297
    %v1299 = vmul.f32 1.0, %v1298
    %v1300 = vtanh.pop %v1293
    %v1301 = vmul.f32 %v1299, %v1233
    %1303 = vrot.lane.b32.xlu0 %v1300, 64
    %v1304 = vpop.permute.xlu0 %1303
    %v1306 = vmul.f32 %v1299, %v1304
    %1308 = vrot.lane.b32.xlu0 %v1306, 32
    %v1309 = vpop.permute.xlu0 %1308
    %v1311 = vadd.f32 %v1301, %v1309
    %v1312 = vtanh.pop %v1311
    %1314 = vrot.lane.b32.xlu0 %v1312, 64
    %v1315 = vpop.permute.xlu0 %1314
    %v1317 = vmul.f32 %v1299, %v1315
    %1319 = vrot.lane.b32.xlu0 %v1317, 32
    %v1320 = vpop.permute.xlu0 %1319
    %1322 = vst.msk [vmem:[#allocation2 + $0x2] sm:$0x3] %vm525, %v1320
    %v1323 = vld [vmem:[#allocation3 + $0x4] sm:$0x3]
    %v1324 = vpack.c.bf16 %v1317, %v1317
    %1326 = vrot.lane.b32.xlu0 %v1324, 32
    %v1327 = vpop.permute.xlu0 %1326
    %v1329 = vsel %vm452, %v1327, 0
    %1331 = vmatprep.subr.bf16.mxu0 0
    %1332 = vmatpush1.bf16.msra.mxu0 0
    %1333 = vmatprep.subr.bf16.mxu0 0
    %1334 = vmatpush1.bf16.msra.mxu0 0
    %1335 = vmatprep.subr.bf16.mxu0 0
    %1336 = vmatpush1.bf16.msra.mxu0 0
    %1337 = vmatprep.subr.bf16.mxu0 0
    %1338 = vmatpush1.bf16.msra.mxu0 0
    %1339 = vmatprep.subr.bf16.mxu0 0
    %1340 = vmatpush1.bf16.msra.mxu0 0
    %1341 = vmatprep.subr.bf16.mxu0 0
    %1342 = vmatpush1.bf16.msra.mxu0 0
    %1343 = vmatprep.subr.bf16.mxu0 0
    %1344 = vmatpush1.bf16.msra.mxu0 %v1172
    %1345 = vmatprep.subr.bf16.mxu0 0
    %1346 = vmatpush1.bf16.msra.mxu0 %v1171
    %1347 = vmatprep.subr.bf16.mxu0 0
    %1348 = vmatpush2.bf16.msra.mxu0 0
    %1349 = vmatprep.subr.bf16.mxu0 0
    %1350 = vmatpush2.bf16.msra.mxu0 0
    %1351 = vmatprep.subr.bf16.mxu0 0
    %1352 = vmatpush2.bf16.msra.mxu0 0
    %1353 = vmatprep.subr.bf16.mxu0 0
    %1354 = vmatpush2.bf16.msra.mxu0 0
    %1355 = vmatprep.subr.bf16.mxu0 0
    %1356 = vmatpush2.bf16.msra.mxu0 0
    %1357 = vmatprep.subr.bf16.mxu0 0
    %1358 = vmatpush2.bf16.msra.mxu0 0
    %1359 = vmatprep.subr.bf16.mxu0 0
    %1360 = vmatpush2.bf16.msra.mxu0 0
    %1361 = vmatprep.subr.bf16.mxu0 0
    %1362 = vmatpush2.bf16.msra.mxu0 0
    %1363 = vmatprep.mubr.bf16.mxu0 0
    %1364 = vmatmul.mubr.bf16.gmra.mxu0 %v1329
    %v1365 = vpop.f32.mrf.mxu0
    %v1366 = vadd.f32 0.0, %v1365
    %v1367 = vpop.f32.mrf.mxu0
    %v1368 = vpop.f32.mrf.mxu0
    %v1369 = vpop.f32.mrf.mxu0
    %1370 = vdwg.mxu0
    %v1371 = vadd.f32 %v1323, %v1366
    %v1372 = vxor.u32 %v1371, 2147483648
    %v1373 = vmul.f32 %v1372, 1.442695
    %v1374 = vpow.pop %v1373
    %v1375 = vadd.f32 %v1374, 1.0
    %v1376 = vrcp.pop %v1375
    %v1377 = vmul.f32 1.0, %v1376
    %v1378 = vtanh.pop %v1371
    %v1379 = vmul.f32 %v1377, %v1311
    %1381 = vrot.lane.b32.xlu0 %v1378, 64
    %v1382 = vpop.permute.xlu0 %1381
    %v1384 = vmul.f32 %v1377, %v1382
    %1386 = vrot.lane.b32.xlu0 %v1384, 32
    %v1387 = vpop.permute.xlu0 %1386
    %v1389 = vadd.f32 %v1379, %v1387
    %v1390 = vtanh.pop %v1389
    %1392 = vrot.lane.b32.xlu0 %v1390, 64
    %v1393 = vpop.permute.xlu0 %1392
    %v1395 = vmul.f32 %v1377, %v1393
    %1397 = vrot.lane.b32.xlu0 %v1395, 32
    %v1398 = vpop.permute.xlu0 %1397
    %1400 = vst.msk [vmem:[#allocation2 + $0x4] sm:$0x3] %vm525, %v1398
    %v1401 = vld [vmem:[#allocation3 + $0x6] sm:$0x3]
    %v1402 = vpack.c.bf16 %v1395, %v1395
    %1404 = vrot.lane.b32.xlu0 %v1402, 32
    %v1405 = vpop.permute.xlu0 %1404
    %v1407 = vsel %vm452, %v1405, 0
    %1409 = vmatprep.subr.bf16.mxu0 0
    %1410 = vmatpush1.bf16.msra.mxu0 0
    %1411 = vmatprep.subr.bf16.mxu0 0
    %1412 = vmatpush1.bf16.msra.mxu0 0
    %1413 = vmatprep.subr.bf16.mxu0 0
    %1414 = vmatpush1.bf16.msra.mxu0 0
    %1415 = vmatprep.subr.bf16.mxu0 0
    %1416 = vmatpush1.bf16.msra.mxu0 0
    %1417 = vmatprep.subr.bf16.mxu0 0
    %1418 = vmatpush1.bf16.msra.mxu0 0
    %1419 = vmatprep.subr.bf16.mxu0 0
    %1420 = vmatpush1.bf16.msra.mxu0 0
    %1421 = vmatprep.subr.bf16.mxu0 0
    %1422 = vmatpush1.bf16.msra.mxu0 %v1172
    %1423 = vmatprep.subr.bf16.mxu0 0
    %1424 = vmatpush1.bf16.msra.mxu0 %v1171
    %1425 = vmatprep.subr.bf16.mxu0 0
    %1426 = vmatpush2.bf16.msra.mxu0 0
    %1427 = vmatprep.subr.bf16.mxu0 0
    %1428 = vmatpush2.bf16.msra.mxu0 0
    %1429 = vmatprep.subr.bf16.mxu0 0
    %1430 = vmatpush2.bf16.msra.mxu0 0
    %1431 = vmatprep.subr.bf16.mxu0 0
    %1432 = vmatpush2.bf16.msra.mxu0 0
    %1433 = vmatprep.subr.bf16.mxu0 0
    %1434 = vmatpush2.bf16.msra.mxu0 0
    %1435 = vmatprep.subr.bf16.mxu0 0
    %1436 = vmatpush2.bf16.msra.mxu0 0
    %1437 = vmatprep.subr.bf16.mxu0 0
    %1438 = vmatpush2.bf16.msra.mxu0 0
    %1439 = vmatprep.subr.bf16.mxu0 0
    %1440 = vmatpush2.bf16.msra.mxu0 0
    %1441 = vmatprep.mubr.bf16.mxu0 0
    %1442 = vmatmul.mubr.bf16.gmra.mxu0 %v1407
    %v1443 = vpop.f32.mrf.mxu0
    %v1444 = vadd.f32 0.0, %v1443
    %v1445 = vpop.f32.mrf.mxu0
    %v1446 = vpop.f32.mrf.mxu0
    %v1447 = vpop.f32.mrf.mxu0
    %1448 = vdwg.mxu0
    %v1449 = vadd.f32 %v1401, %v1444
    %v1450 = vxor.u32 %v1449, 2147483648
    %v1451 = vmul.f32 %v1450, 1.442695
    %v1452 = vpow.pop %v1451
    %v1453 = vadd.f32 %v1452, 1.0
    %v1454 = vrcp.pop %v1453
    %v1455 = vmul.f32 1.0, %v1454
    %v1456 = vtanh.pop %v1449
    %v1457 = vmul.f32 %v1455, %v1389
    %1459 = vrot.lane.b32.xlu0 %v1456, 64
    %v1460 = vpop.permute.xlu0 %1459
    %v1462 = vmul.f32 %v1455, %v1460
    %1464 = vrot.lane.b32.xlu0 %v1462, 32
    %v1465 = vpop.permute.xlu0 %1464
    %v1467 = vadd.f32 %v1457, %v1465
    %v1468 = vtanh.pop %v1467
    %1470 = vrot.lane.b32.xlu0 %v1468, 64
    %v1471 = vpop.permute.xlu0 %1470
    %v1473 = vmul.f32 %v1455, %v1471
    %1475 = vrot.lane.b32.xlu0 %v1473, 32
    %v1476 = vpop.permute.xlu0 %1475
    %1478 = vst.msk [vmem:[#allocation2 + $0x6] sm:$0x3] %vm525, %v1476
    %v1479 = vld [vmem:[#allocation3 + $0x8] sm:$0x3]
    %v1480 = vpack.c.bf16 %v1473, %v1473
    %1482 = vrot.lane.b32.xlu0 %v1480, 32
    %v1483 = vpop.permute.xlu0 %1482
    %v1485 = vsel %vm452, %v1483, 0
    %1487 = vmatprep.subr.bf16.mxu0 0
    %1488 = vmatpush1.bf16.msra.mxu0 0
    %1489 = vmatprep.subr.bf16.mxu0 0
    %1490 = vmatpush1.bf16.msra.mxu0 0
    %1491 = vmatprep.subr.bf16.mxu0 0
    %1492 = vmatpush1.bf16.msra.mxu0 0
    %1493 = vmatprep.subr.bf16.mxu0 0
    %1494 = vmatpush1.bf16.msra.mxu0 0
    %1495 = vmatprep.subr.bf16.mxu0 0
    %1496 = vmatpush1.bf16.msra.mxu0 0
    %1497 = vmatprep.subr.bf16.mxu0 0
    %1498 = vmatpush1.bf16.msra.mxu0 0
    %1499 = vmatprep.subr.bf16.mxu0 0
    %1500 = vmatpush1.bf16.msra.mxu0 %v1172
    %1501 = vmatprep.subr.bf16.mxu0 0
    %1502 = vmatpush1.bf16.msra.mxu0 %v1171
    %1503 = vmatprep.subr.bf16.mxu0 0
    %1504 = vmatpush2.bf16.msra.mxu0 0
    %1505 = vmatprep.subr.bf16.mxu0 0
    %1506 = vmatpush2.bf16.msra.mxu0 0
    %1507 = vmatprep.subr.bf16.mxu0 0
    %1508 = vmatpush2.bf16.msra.mxu0 0
    %1509 = vmatprep.subr.bf16.mxu0 0
    %1510 = vmatpush2.bf16.msra.mxu0 0
    %1511 = vmatprep.subr.bf16.mxu0 0
    %1512 = vmatpush2.bf16.msra.mxu0 0
    %1513 = vmatprep.subr.bf16.mxu0 0
    %1514 = vmatpush2.bf16.msra.mxu0 0
    %1515 = vmatprep.subr.bf16.mxu0 0
    %1516 = vmatpush2.bf16.msra.mxu0 0
    %1517 = vmatprep.subr.bf16.mxu0 0
    %1518 = vmatpush2.bf16.msra.mxu0 0
    %1519 = vmatprep.mubr.bf16.mxu0 0
    %1520 = vmatmul.mubr.bf16.gmra.mxu0 %v1485
    %v1521 = vpop.f32.mrf.mxu0
    %v1522 = vadd.f32 0.0, %v1521
    %v1523 = vpop.f32.mrf.mxu0
    %v1524 = vpop.f32.mrf.mxu0
    %v1525 = vpop.f32.mrf.mxu0
    %1526 = vdwg.mxu0
    %v1527 = vadd.f32 %v1479, %v1522
    %v1528 = vxor.u32 %v1527, 2147483648
    %v1529 = vmul.f32 %v1528, 1.442695
    %v1530 = vpow.pop %v1529
    %v1531 = vadd.f32 %v1530, 1.0
    %v1532 = vrcp.pop %v1531
    %v1533 = vmul.f32 1.0, %v1532
    %v1534 = vtanh.pop %v1527
    %v1535 = vmul.f32 %v1533, %v1467
    %1537 = vrot.lane.b32.xlu0 %v1534, 64
    %v1538 = vpop.permute.xlu0 %1537
    %v1540 = vmul.f32 %v1533, %v1538
    %1542 = vrot.lane.b32.xlu0 %v1540, 32
    %v1543 = vpop.permute.xlu0 %1542
    %v1545 = vadd.f32 %v1535, %v1543
    %v1546 = vtanh.pop %v1545
    %1548 = vrot.lane.b32.xlu0 %v1546, 64
    %v1549 = vpop.permute.xlu0 %1548
    %v1551 = vmul.f32 %v1533, %v1549
    %1553 = vrot.lane.b32.xlu0 %v1551, 32
    %v1554 = vpop.permute.xlu0 %1553
    %1556 = vst.msk [vmem:[#allocation2 + $0x8] sm:$0x3] %vm525, %v1554
    %v1557 = vld [vmem:[#allocation3 + $0xa] sm:$0x3]
    %v1558 = vpack.c.bf16 %v1551, %v1551
    %1560 = vrot.lane.b32.xlu0 %v1558, 32
    %v1561 = vpop.permute.xlu0 %1560
    %v1563 = vsel %vm452, %v1561, 0
    %1565 = vmatprep.subr.bf16.mxu0 0
    %1566 = vmatpush1.bf16.msra.mxu0 0
    %1567 = vmatprep.subr.bf16.mxu0 0
    %1568 = vmatpush1.bf16.msra.mxu0 0
    %1569 = vmatprep.subr.bf16.mxu0 0
    %1570 = vmatpush1.bf16.msra.mxu0 0
    %1571 = vmatprep.subr.bf16.mxu0 0
    %1572 = vmatpush1.bf16.msra.mxu0 0
    %1573 = vmatprep.subr.bf16.mxu0 0
    %1574 = vmatpush1.bf16.msra.mxu0 0
    %1575 = vmatprep.subr.bf16.mxu0 0
    %1576 = vmatpush1.bf16.msra.mxu0 0
    %1577 = vmatprep.subr.bf16.mxu0 0
    %1578 = vmatpush1.bf16.msra.mxu0 %v1172
    %1579 = vmatprep.subr.bf16.mxu0 0
    %1580 = vmatpush1.bf16.msra.mxu0 %v1171
    %1581 = vmatprep.subr.bf16.mxu0 0
    %1582 = vmatpush2.bf16.msra.mxu0 0
    %1583 = vmatprep.subr.bf16.mxu0 0
    %1584 = vmatpush2.bf16.msra.mxu0 0
    %1585 = vmatprep.subr.bf16.mxu0 0
    %1586 = vmatpush2.bf16.msra.mxu0 0
    %1587 = vmatprep.subr.bf16.mxu0 0
    %1588 = vmatpush2.bf16.msra.mxu0 0
    %1589 = vmatprep.subr.bf16.mxu0 0
    %1590 = vmatpush2.bf16.msra.mxu0 0
    %1591 = vmatprep.subr.bf16.mxu0 0
    %1592 = vmatpush2.bf16.msra.mxu0 0
    %1593 = vmatprep.subr.bf16.mxu0 0
    %1594 = vmatpush2.bf16.msra.mxu0 0
    %1595 = vmatprep.subr.bf16.mxu0 0
    %1596 = vmatpush2.bf16.msra.mxu0 0
    %1597 = vmatprep.mubr.bf16.mxu0 0
    %1598 = vmatmul.mubr.bf16.gmra.mxu0 %v1563
    %v1599 = vpop.f32.mrf.mxu0
    %v1600 = vadd.f32 0.0, %v1599
    %v1601 = vpop.f32.mrf.mxu0
    %v1602 = vpop.f32.mrf.mxu0
    %v1603 = vpop.f32.mrf.mxu0
    %1604 = vdwg.mxu0
    %v1605 = vadd.f32 %v1557, %v1600
    %v1606 = vxor.u32 %v1605, 2147483648
    %v1607 = vmul.f32 %v1606, 1.442695
    %v1608 = vpow.pop %v1607
    %v1609 = vadd.f32 %v1608, 1.0
    %v1610 = vrcp.pop %v1609
    %v1611 = vmul.f32 1.0, %v1610
    %v1612 = vtanh.pop %v1605
    %v1613 = vmul.f32 %v1611, %v1545
    %1615 = vrot.lane.b32.xlu0 %v1612, 64
    %v1616 = vpop.permute.xlu0 %1615
    %v1618 = vmul.f32 %v1611, %v1616
    %1620 = vrot.lane.b32.xlu0 %v1618, 32
    %v1621 = vpop.permute.xlu0 %1620
    %v1623 = vadd.f32 %v1613, %v1621
    %v1624 = vtanh.pop %v1623
    %1626 = vrot.lane.b32.xlu0 %v1624, 64
    %v1627 = vpop.permute.xlu0 %1626
    %v1629 = vmul.f32 %v1611, %v1627
    %1631 = vrot.lane.b32.xlu0 %v1629, 32
    %v1632 = vpop.permute.xlu0 %1631
    %1634 = vst.msk [vmem:[#allocation2 + $0xa] sm:$0x3] %vm525, %v1632
    %v1635 = vld [vmem:[#allocation3 + $0xc] sm:$0x3]
    %v1636 = vpack.c.bf16 %v1629, %v1629
    %1638 = vrot.lane.b32.xlu0 %v1636, 32
    %v1639 = vpop.permute.xlu0 %1638
    %v1641 = vsel %vm452, %v1639, 0
    %1643 = vmatprep.subr.bf16.mxu0 0
    %1644 = vmatpush1.bf16.msra.mxu0 0
    %1645 = vmatprep.subr.bf16.mxu0 0
    %1646 = vmatpush1.bf16.msra.mxu0 0
    %1647 = vmatprep.subr.bf16.mxu0 0
    %1648 = vmatpush1.bf16.msra.mxu0 0
    %1649 = vmatprep.subr.bf16.mxu0 0
    %1650 = vmatpush1.bf16.msra.mxu0 0
    %1651 = vmatprep.subr.bf16.mxu0 0
    %1652 = vmatpush1.bf16.msra.mxu0 0
    %1653 = vmatprep.subr.bf16.mxu0 0
    %1654 = vmatpush1.bf16.msra.mxu0 0
    %1655 = vmatprep.subr.bf16.mxu0 0
    %1656 = vmatpush1.bf16.msra.mxu0 %v1172
    %1657 = vmatprep.subr.bf16.mxu0 0
    %1658 = vmatpush1.bf16.msra.mxu0 %v1171
    %1659 = vmatprep.subr.bf16.mxu0 0
    %1660 = vmatpush2.bf16.msra.mxu0 0
    %1661 = vmatprep.subr.bf16.mxu0 0
    %1662 = vmatpush2.bf16.msra.mxu0 0
    %1663 = vmatprep.subr.bf16.mxu0 0
    %1664 = vmatpush2.bf16.msra.mxu0 0
    %1665 = vmatprep.subr.bf16.mxu0 0
    %1666 = vmatpush2.bf16.msra.mxu0 0
    %1667 = vmatprep.subr.bf16.mxu0 0
    %1668 = vmatpush2.bf16.msra.mxu0 0
    %1669 = vmatprep.subr.bf16.mxu0 0
    %1670 = vmatpush2.bf16.msra.mxu0 0
    %1671 = vmatprep.subr.bf16.mxu0 0
    %1672 = vmatpush2.bf16.msra.mxu0 0
    %1673 = vmatprep.subr.bf16.mxu0 0
    %1674 = vmatpush2.bf16.msra.mxu0 0
    %1675 = vmatprep.mubr.bf16.mxu0 0
    %1676 = vmatmul.mubr.bf16.gmra.mxu0 %v1641
    %v1677 = vpop.f32.mrf.mxu0
    %v1678 = vadd.f32 0.0, %v1677
    %v1679 = vpop.f32.mrf.mxu0
    %v1680 = vpop.f32.mrf.mxu0
    %v1681 = vpop.f32.mrf.mxu0
    %1682 = vdwg.mxu0
    %v1683 = vadd.f32 %v1635, %v1678
    %v1684 = vxor.u32 %v1683, 2147483648
    %v1685 = vmul.f32 %v1684, 1.442695
    %v1686 = vpow.pop %v1685
    %v1687 = vadd.f32 %v1686, 1.0
    %v1688 = vrcp.pop %v1687
    %v1689 = vmul.f32 1.0, %v1688
    %v1690 = vtanh.pop %v1683
    %v1691 = vmul.f32 %v1689, %v1623
    %1693 = vrot.lane.b32.xlu0 %v1690, 64
    %v1694 = vpop.permute.xlu0 %1693
    %v1696 = vmul.f32 %v1689, %v1694
    %1698 = vrot.lane.b32.xlu0 %v1696, 32
    %v1699 = vpop.permute.xlu0 %1698
    %v1701 = vadd.f32 %v1691, %v1699
    %v1702 = vtanh.pop %v1701
    %1704 = vrot.lane.b32.xlu0 %v1702, 64
    %v1705 = vpop.permute.xlu0 %1704
    %v1707 = vmul.f32 %v1689, %v1705
    %1709 = vrot.lane.b32.xlu0 %v1707, 32
    %v1710 = vpop.permute.xlu0 %1709
    %1712 = vst.msk [vmem:[#allocation2 + $0xc] sm:$0x3] %vm525, %v1710
    %v1713 = vld [vmem:[#allocation3 + $0xe] sm:$0x3]
    %v1714 = vpack.c.bf16 %v1707, %v1707
    %1716 = vrot.lane.b32.xlu0 %v1714, 32
    %v1717 = vpop.permute.xlu0 %1716
    %v1719 = vsel %vm452, %v1717, 0
    %1721 = vmatprep.subr.bf16.mxu0 0
    %1722 = vmatpush1.bf16.msra.mxu0 0
    %1723 = vmatprep.subr.bf16.mxu0 0
    %1724 = vmatpush1.bf16.msra.mxu0 0
    %1725 = vmatprep.subr.bf16.mxu0 0
    %1726 = vmatpush1.bf16.msra.mxu0 0
    %1727 = vmatprep.subr.bf16.mxu0 0
    %1728 = vmatpush1.bf16.msra.mxu0 0
    %1729 = vmatprep.subr.bf16.mxu0 0
    %1730 = vmatpush1.bf16.msra.mxu0 0
    %1731 = vmatprep.subr.bf16.mxu0 0
    %1732 = vmatpush1.bf16.msra.mxu0 0
    %1733 = vmatprep.subr.bf16.mxu0 0
    %1734 = vmatpush1.bf16.msra.mxu0 %v1172
    %1735 = vmatprep.subr.bf16.mxu0 0
    %1736 = vmatpush1.bf16.msra.mxu0 %v1171
    %1737 = vmatprep.subr.bf16.mxu0 0
    %1738 = vmatpush2.bf16.msra.mxu0 0
    %1739 = vmatprep.subr.bf16.mxu0 0
    %1740 = vmatpush2.bf16.msra.mxu0 0
    %1741 = vmatprep.subr.bf16.mxu0 0
    %1742 = vmatpush2.bf16.msra.mxu0 0
    %1743 = vmatprep.subr.bf16.mxu0 0
    %1744 = vmatpush2.bf16.msra.mxu0 0
    %1745 = vmatprep.subr.bf16.mxu0 0
    %1746 = vmatpush2.bf16.msra.mxu0 0
    %1747 = vmatprep.subr.bf16.mxu0 0
    %1748 = vmatpush2.bf16.msra.mxu0 0
    %1749 = vmatprep.subr.bf16.mxu0 0
    %1750 = vmatpush2.bf16.msra.mxu0 0
    %1751 = vmatprep.subr.bf16.mxu0 0
    %1752 = vmatpush2.bf16.msra.mxu0 0
    %1753 = vmatprep.mubr.bf16.mxu0 0
    %1754 = vmatmul.mubr.bf16.gmra.mxu0 %v1719
    %v1755 = vpop.f32.mrf.mxu0
    %v1756 = vadd.f32 0.0, %v1755
    %v1757 = vpop.f32.mrf.mxu0
    %v1758 = vpop.f32.mrf.mxu0
    %v1759 = vpop.f32.mrf.mxu0
    %1760 = vdwg.mxu0
    %v1761 = vadd.f32 %v1713, %v1756
    %v1762 = vxor.u32 %v1761, 2147483648
    %v1763 = vmul.f32 %v1762, 1.442695
    %v1764 = vpow.pop %v1763
    %v1765 = vadd.f32 %v1764, 1.0
    %v1766 = vrcp.pop %v1765
    %v1767 = vmul.f32 1.0, %v1766
    %v1768 = vtanh.pop %v1761
    %v1769 = vmul.f32 %v1767, %v1701
    %1771 = vrot.lane.b32.xlu0 %v1768, 64
    %v1772 = vpop.permute.xlu0 %1771
    %v1774 = vmul.f32 %v1767, %v1772
    %1776 = vrot.lane.b32.xlu0 %v1774, 32
    %v1777 = vpop.permute.xlu0 %1776
    %v1779 = vadd.f32 %v1769, %v1777
    %v1780 = vtanh.pop %v1779
    %1782 = vrot.lane.b32.xlu0 %v1780, 64
    %v1783 = vpop.permute.xlu0 %1782
    %v1785 = vmul.f32 %v1767, %v1783
    %1787 = vrot.lane.b32.xlu0 %v1785, 32
    %v1788 = vpop.permute.xlu0 %1787
    %1790 = vst.msk [vmem:[#allocation2 + $0xe] sm:$0x3] %vm525, %v1788
    %s1791 = scalar_lea.vmem [#allocation22], 2
    %1792 = vst.msk [vmem:[%s1791] sm:$0x3] %vm525, %v1788
    %1794 = vrot.lane.b32.xlu0 %v1779, 96
    %v1795 = vpop.permute.xlu0 %1794
    %s1797 = scalar_lea.vmem [#allocation24], 2
    %1798 = vst.msk [vmem:[%s1797] sm:$0x3] %vm525, %v1795
    %v1799 = vld [vmem:[#allocation2] sm:$0xff]
    %v1800 = vld [vmem:[#allocation2 + $0x8] sm:$0xff]
    %v1801 = vpack.c.bf16 %v1800, %v1799
    %v1802 = vld [vmem:[#allocation19] sm:$0xf]
    %v1803 = vld [vmem:[#allocation19 + $0x4] sm:$0xf]
    %v1804 = vld [vmem:[#allocation19 + $0x8] sm:$0xf]
    %v1805 = vld [vmem:[#allocation19 + $0xc] sm:$0xf]
    %v1806 = vld [vmem:[%s12] sm:$0x1]
    %v1808 = vlaneseq
    %v1809 = vshrl.u32 %v1808, 7
    %v1810 = vsub.s32 0, %v1809
    %v1811 = vrot.slane %v1806, %v1810
    %v1817 = vunpack.c.l.b16 %v1802
    %v1818 = vunpack.c.l.b16 %v1803
    %v1819 = vunpack.c.l.b16 %v1804
    %v1820 = vunpack.c.l.b16 %v1805
    %v1821 = vpack.c.b16 %v1818, %v1817
    %v1822 = vpack.c.b16 %v1820, %v1819
    %v1826 = vsel %vm452, %v1801, 0
    %1828 = vmatprep.subr.bf16.mxu0 0
    %1829 = vmatpush1.bf16.msra.mxu0 0
    %1830 = vmatprep.subr.bf16.mxu0 0
    %1831 = vmatpush1.bf16.msra.mxu0 0
    %1832 = vmatprep.subr.bf16.mxu0 0
    %1833 = vmatpush1.bf16.msra.mxu0 0
    %1834 = vmatprep.subr.bf16.mxu0 0
    %1835 = vmatpush1.bf16.msra.mxu0 0
    %1836 = vmatprep.subr.bf16.mxu0 0
    %1837 = vmatpush1.bf16.msra.mxu0 0
    %1838 = vmatprep.subr.bf16.mxu0 0
    %1839 = vmatpush1.bf16.msra.mxu0 0
    %1840 = vmatprep.subr.bf16.mxu0 0
    %1841 = vmatpush1.bf16.msra.mxu0 %v1822
    %1842 = vmatprep.subr.bf16.mxu0 0
    %1843 = vmatpush1.bf16.msra.mxu0 %v1821
    %1844 = vmatprep.subr.bf16.mxu0 0
    %1845 = vmatpush2.bf16.msra.mxu0 0
    %1846 = vmatprep.subr.bf16.mxu0 0
    %1847 = vmatpush2.bf16.msra.mxu0 0
    %1848 = vmatprep.subr.bf16.mxu0 0
    %1849 = vmatpush2.bf16.msra.mxu0 0
    %1850 = vmatprep.subr.bf16.mxu0 0
    %1851 = vmatpush2.bf16.msra.mxu0 0
    %1852 = vmatprep.subr.bf16.mxu0 0
    %1853 = vmatpush2.bf16.msra.mxu0 0
    %1854 = vmatprep.subr.bf16.mxu0 0
    %1855 = vmatpush2.bf16.msra.mxu0 0
    %1856 = vmatprep.subr.bf16.mxu0 0
    %1857 = vmatpush2.bf16.msra.mxu0 0
    %1858 = vmatprep.subr.bf16.mxu0 0
    %1859 = vmatpush2.bf16.msra.mxu0 0
    %1860 = vmatprep.mubr.bf16.mxu0 0
    %1861 = vmatmul.mubr.bf16.gmra.mxu0 %v1826
    %v1862 = vpop.f32.mrf.mxu0
    %v1863 = vadd.f32 %v1811, %v1862
    %v1864 = vpop.f32.mrf.mxu0
    %v1865 = vpop.f32.mrf.mxu0
    %v1866 = vadd.f32 %v1811, %v1865
    %v1867 = vpop.f32.mrf.mxu0
    %1868 = vdwg.mxu0
    %1869 = vst.msk [vmem:[#allocation21] sm:$0xff] %vm387, %v1863
    %1870 = vst.msk [vmem:[#allocation21 + $0x8] sm:$0xff] %vm387, %v1866
    // Predicated region
    $region94: #{tpu_custom_call.1} parent=1 // pred_check
      _
    $region95: #{tpu_custom_call.1} parent=1 // pred_check_branch
      %1872 = sbr.rel (0) target = $region97
    $region96: #{tpu_custom_call.1} parent=1 // pred_region
      %s1874 = ssub.s32 256, 256
      %1875 = vsyncadd [#allocation6], %s1874
      %s1876 = sshll.u32 [#allocation21], 4
      %s1877 = int_to_ptr.vmem [resolvable:$true] %s1876
      %1882 = dma.vmem_to_hbm [thread:$0]  %s1877, 256, %s13, [#allocation6], 128, 128, 8
    $region97: #{tpu_custom_call.1} parent=1 // pred_fallthru
      _
    // Predicated region
    $region98: #{tpu_custom_call.1} parent=1 // pred_check
      _
    $region99: #{tpu_custom_call.1} parent=1 // pred_check_branch
      %1884 = sbr.rel (0) target = $region101
    $region100: #{tpu_custom_call.1} parent=1 // pred_region
      %s1886 = ssub.s32 64, 64
      %1887 = vsyncadd [#allocation23], %s1886
      %s1888 = sshll.u32 [#allocation22], 4
      %s1889 = int_to_ptr.vmem [resolvable:$true] %s1888
      %1894 = dma.vmem_to_hbm [thread:$0]  %s1889, 64, %s14, [#allocation23], 32, 32, 2
    $region101: #{tpu_custom_call.1} parent=1 // pred_fallthru
      _
    // Predicated region
    $region102: #{tpu_custom_call.1} parent=1 // pred_check
      _
    $region103: #{tpu_custom_call.1} parent=1 // pred_check_branch
      %1896 = sbr.rel (0) target = $region105
    $region104: #{tpu_custom_call.1} parent=1 // pred_region
      %s1898 = ssub.s32 64, 64
      %1899 = vsyncadd [#allocation23], %s1898
      %s1900 = sshll.u32 [#allocation24], 4
      %s1901 = int_to_ptr.vmem [resolvable:$true] %s1900
      %1906 = dma.vmem_to_hbm [thread:$0]  %s1901, 64, %s15, [#allocation23], 32, 32, 2
    $region105: #{tpu_custom_call.1} parent=1 // pred_fallthru
      _
    // Predicated region
    $region106: #{tpu_custom_call.1} parent=1 // pred_check
      _
    $region107: #{tpu_custom_call.1} parent=1 // pred_check_branch
      %1908 = sbr.rel (0) target = $region109
    $region108: #{tpu_custom_call.1} parent=1 // pred_region
      %1909 = dma.done [#allocation6], 256
    $region109: #{tpu_custom_call.1} parent=1 // pred_fallthru
      _
    // Predicated region
    $region110: #{tpu_custom_call.1} parent=1 // pred_check
      _
    $region111: #{tpu_custom_call.1} parent=1 // pred_check_branch
      %1911 = sbr.rel (0) target = $region113
    $region112: #{tpu_custom_call.1} parent=1 // pred_region
      %1912 = dma.done [#allocation23], 64
    $region113: #{tpu_custom_call.1} parent=1 // pred_fallthru
      _
    // Predicated region
    $region114: #{tpu_custom_call.1} parent=1 // pred_check
      _
    $region115: #{tpu_custom_call.1} parent=1 // pred_check_branch
      %1914 = sbr.rel (0) target = $region117
    $region116: #{tpu_custom_call.1} parent=1 // pred_region
      %1915 = dma.done [#allocation23], 64
    $region117: #{tpu_custom_call.1} parent=1 // pred_fallthru
      _
    %1916 = vsyncpa [#allocation5], 1
    %1917 = vsyncpa [#allocation8], 1
    %1918 = vsyncpa [#allocation11], 1
    %1919 = vsyncpa [#allocation14], 1
    %1920 = vsyncpa [#allocation17], 1
    %1921 = vsyncpa [#allocation20], 1
    %1922 = vsyncpa [#allocation6], 1
    %1923 = vsyncpa [#allocation23], 1

</llo_original>
